<compile_context>
chip_gen: v7x
topology: tpu7x:2x2x1
jax: 0.10.0
libtpu: 0.0.40
codegen_flags: <defaults>
</compile_context>

<pallas_src>
import functools

import jax
import jax.numpy as jnp
from jax.experimental import pallas as pl
from jax.experimental.pallas import tpu as pltpu

# ---- module hyper-parameters (NonlinearFilter(Nmodes, step, ntaps, share)) ----
NMODES = 2
STEP = 2
NTAPS = 9
SHARE = False
GAMMA = 0.0016567
LFIBER = 2000000.0


def _nlf_kernel(coef_ref, x_ref, xh_ref, o_ref, *, nmodes, batch, ntaps, tile):
    """One grid step == one lane tile of the (padded) output sequence.

    coef_ref : VMEM [Nmodes*B, Nmodes*ntaps]
               coef[p*B+b, k*ntaps+t] = K[p, (p+k)%Nmodes, t] * gamma*P[b]*L/step
    x_ref    : VMEM [2*Nmodes*B, tile]   main tile, rows = part*(Nmodes*B)+mode*B+b
    xh_ref   : VMEM [2*Nmodes*B, 128]    halo: the 128 samples right after the tile
    o_ref    : VMEM [2*Nmodes*B, tile]
    """
    r = nmodes * batch            # rows per real/imag part == output rows per part
    half = ntaps // 2

    x_main = x_ref[...]                                            # [2r, tile]
    x_halo = xh_ref[...]                                           # [2r, 128]

    # |x|^2 on main tile and halo separately -> one [r, tile+128] power slab
    # (half the rows of the old full x slab).
    pw_main = x_main[:r] * x_main[:r] + x_main[r:] * x_main[r:]    # [r, tile]
    pw_halo = x_halo[:r] * x_halo[:r] + x_halo[r:] * x_halo[r:]    # [r, 128]
    power = jnp.concatenate([pw_main, pw_halo], axis=1)            # [r, tile+128]

    # theta[p*B+b, n] = sum_{k,t} coef[p*B+b, k*ntaps+t]
    #                            * power[((p+k)%Nmodes)*B+b, n+t]
    # k == 0 uses `power` as-is; k >= 1 uses one mode-block rotation of it.
    theta = None
    for k in range(nmodes):
        if k == 0:
            pw_k = power
        else:
            s = k * batch
            pw_k = jnp.concatenate([power[s:], power[:s]], axis=0)  # [r, tile+128]
        for t in range(ntaps):
            col = k * ntaps + t
            c = coef_ref[:, col:col + 1]                            # [r, 1]
            term = c * pw_k[:, t:t + tile]                          # [r, tile]
            theta = term if theta is None else theta + term

    cth = jnp.cos(theta)                                            # EUP
    sth = jnp.sin(theta)

    # Center crop x[:, half : half+tile]: first (tile-half) lanes of the main
    # tile plus the first `half` halo lanes — one [2r, tile] assembly.
    if half > 0:
        x_c = jnp.concatenate([x_main[:, half:], x_halo[:, :half]], axis=1)
    else:
        x_c = x_main
    xr_c = x_c[:r]
    xi_c = x_c[r:]

    # (xr + i*xi) * (cos + i*sin) -> single full-block, unmasked store.
    o_ref[...] = jnp.concatenate(
        [xr_c * cth - xi_c * sth, xr_c * sth + xi_c * cth], axis=0)


def nonlinear_filter_apply(x, task_info, i, kernels, *,
                           nmodes=NMODES, step=STEP, ntaps=NTAPS,
                           gamma=GAMMA, L=LFIBER, tile=2048):
    """x: complex64 [B, M, Nmodes] -> complex64 [B, M - ntaps + 1, Nmodes]."""
    B, M, nm = x.shape
    assert nm == nmodes
    l_out = M - ntaps + 1

    # ---- scalar glue (plain JAX) ----
    P = 0.001 * 10.0 ** (task_info[:, 0] / 10.0) / nmodes          # [B]
    scale = (gamma * P * L / step).astype(jnp.float32)             # [B]
    k = kernels[min(i, len(kernels) - 1)].astype(jnp.float32)      # [p, q, t]
    # relative-mode coefficient table (lets the kernel skip power replication):
    #   coef[p*B+b, kk*ntaps+t] = K[p, (p+kk)%Nmodes, t] * scale[b]
    p_idx = jnp.arange(nmodes)
    rel_q = (p_idx[:, None] + jnp.arange(nmodes)[None, :]) % nmodes    # [p, kk]
    k_rel = k[p_idx[:, None], rel_q, :]                                # [p, kk, t]
    coef = (k_rel[:, None, :, :] * scale[None, :, None, None]).reshape(
        nmodes * B, nmodes * ntaps)                                # [Nmodes*B, Nmodes*ntaps]

    # ---- layout: fused real|imag, mode-major rows, sequence on lanes ----
    # TODO(synk): keep this channel-major [2*Nmodes*B, M] f32 layout end-to-end
    # across the surrounding DBP chain so these wrapper HBM passes (real/imag
    # split, transpose, pad, and the output recombine) disappear; the kernel
    # itself is HBM-bound and these passes dominate wall-clock.
    xr = jnp.real(x).astype(jnp.float32)
    xi = jnp.imag(x).astype(jnp.float32)

    def to_rows(a):                                                # [B,M,Q] -> [Q*B, M]
        return jnp.transpose(a, (2, 0, 1)).reshape(nmodes * B, M)

    xin = jnp.concatenate([to_rows(xr), to_rows(xi)], axis=0)      # [2*Nmodes*B, M]

    # ---- tiling: big lane-dense tiles, but keep >=2 grid steps (v7x: 2 TCs) ----
    tile = max(128, (int(tile) // 128) * 128)
    tile = min(tile, ((l_out + 127) // 128) * 128)                 # don't exceed sequence
    if l_out > 128 and -(-l_out // tile) < 2:
        tile = max(128, ((-(-l_out // 2)) + 127) // 128 * 128)
    n_tiles = -(-l_out // tile)
    l_pad = n_tiles * tile
    m_pad = l_pad + 128                    # room for the halo tile of the last block
    xin = jnp.pad(xin, ((0, 0), (0, m_pad - M)))

    rows = 2 * nmodes * B
    r_half = nmodes * B
    halo_stride = tile // 128

    kern = functools.partial(_nlf_kernel, nmodes=nmodes, batch=B,
                             ntaps=ntaps, tile=tile)

    # Double-buffered in/out tiles + halo + in-kernel temporaries; generous
    # headroom, clamped so it stays safe on v7x (64 MiB physical VMEM).
    vmem_bytes = int(min(64 * 1024 * 1024,
                         max(16 * 1024 * 1024, 12 * rows * tile * 4)))

    out = pl.pallas_call(
        kern,
        out_shape=jax.ShapeDtypeStruct((rows, l_pad), jnp.float32),
        grid_spec=pltpu.PrefetchScalarGridSpec(
            num_scalar_prefetch=0,
            grid=(n_tiles,),
            in_specs=[
                # tiny, grid-invariant coefficient table
                pl.BlockSpec((r_half, nmodes * ntaps), lambda j: (0, 0)),
                # main tile (blocked in units of `tile`)
                pl.BlockSpec((rows, tile), lambda j: (0, j)),
                # halo: same array, 128-wide block starting right after the tile
                pl.BlockSpec((rows, 128), lambda j: (0, (j + 1) * halo_stride)),
            ],
            out_specs=pl.BlockSpec((rows, tile), lambda j: (0, j)),
        ),
        compiler_params=pltpu.CompilerParams(
            dimension_semantics=("parallel",),
            vmem_limit_bytes=vmem_bytes),
    )(coef, xin, xin)

    # back to the torch convention [B, L_out, Nmodes], complex64
    out_r = out[:r_half, :l_out].reshape(nmodes, B, l_out)
    out_i = out[r_half:, :l_out].reshape(nmodes, B, l_out)
    res = (out_r + 1j * out_i).transpose(1, 2, 0)
    return res.astype(jnp.complex64)


def nonlinear_filter_ref(x, task_info, i, kernels, *,
                         nmodes, step, ntaps, gamma, L):
    """Pure-JAX reference mirroring the PyTorch forward."""
    B, M, _ = x.shape
    l_out = M - ntaps + 1
    P = 0.001 * 10.0 ** (task_info[:, 0] / 10.0) / nmodes
    k = kernels[min(i, len(kernels) - 1)]                          # [p, q, t]
    power = jnp.abs(x) ** 2                                        # [B, M, Nmodes]
    windows = jnp.stack([power[:, t:t + l_out, :] for t in range(ntaps)],
                        axis=-1)                                   # [B, L_out, q, t]
    phi = jnp.einsum('blqt,pqt->blp', windows, k)
    x_c = x[:, ntaps // 2: M - ntaps // 2, :]
    return x_c * jnp.exp(1j * phi * gamma * P[:, None, None] * L / step)


if __name__ == "__main__":
    key = jax.random.PRNGKey(0)
    B, M = 2, 600
    k1, k2, k3 = jax.random.split(key, 3)

    xr = jax.random.normal(k1, (B, M, NMODES), jnp.float32)
    xi = jax.random.normal(k2, (B, M, NMODES), jnp.float32)
    x = (xr + 1j * xi).astype(jnp.complex64)

    # task_info[:, 0] = launch power in dBm
    task_info = jnp.stack(
        [jnp.linspace(-2.0, 2.0, B)] + [jnp.zeros(B)] * 3, axis=1
    ).astype(jnp.float32)

    # The torch module initializes Nkernel to zeros (forward would be a pure crop);
    # use small deterministic values instead so the nonlinear phase path is exercised.
    n_num = 1 if SHARE else STEP
    kernels = [0.1 * jax.random.normal(jax.random.fold_in(k3, j),
                                       (NMODES, NMODES, NTAPS), jnp.float32)
               for j in range(n_num)]

    i = 1   # NOTE: must be a static Python int (selects a parameter tensor)
    out = nonlinear_filter_apply(x, task_info, i, kernels)
    out = jax.block_until_ready(out)

    ref = nonlinear_filter_ref(x, task_info, i, kernels,
                               nmodes=NMODES, step=STEP, ntaps=NTAPS,
                               gamma=GAMMA, L=LFIBER)

    assert out.shape == (B, M - NTAPS + 1, NMODES)
    err = float(jnp.max(jnp.abs(out - ref)))
    if err < 1e-4:
        print("KERNEL_OK")
    else:
        print("MISMATCH", err)
</pallas_src>

<mosaic_0001>
module attributes {stable_mosaic.version = 11 : i64} {
  func.func @_nlf_kernel(%arg0: i32, %arg1: memref<4x18xf32, #tpu.memory_space<vmem>>, %arg2: memref<8x384xf32, #tpu.memory_space<vmem>>, %arg3: memref<8x128xf32, #tpu.memory_space<vmem>>, %arg4: memref<8x384xf32, #tpu.memory_space<vmem>>) attributes {dimension_semantics = [#tpu.dimension_semantics<parallel>], iteration_bounds = array<i64: 2>, scalar_prefetch = 0 : i64, scratch_operands = 0 : i64, tpu.core_type = #tpu.core_type<tc>, window_params = [{pipeline_mode = #tpu.pipeline_mode<synchronous>, transform_indices = @transform_0, window_bounds = array<i64: 4, 18>}, {transform_indices = @transform_1, window_bounds = array<i64: 8, 384>}, {transform_indices = @transform_2, window_bounds = array<i64: 8, 128>}, {transform_indices = @transform_3, window_bounds = array<i64: 8, 384>}]} {
    %c0 = arith.constant 0 : index
    %c0_0 = arith.constant 0 : index
    %0 = vector.load %arg2[%c0, %c0_0] : memref<8x384xf32, #tpu.memory_space<vmem>>, vector<8x384xf32>
    %c0_1 = arith.constant 0 : index
    %c0_2 = arith.constant 0 : index
    %1 = vector.load %arg3[%c0_1, %c0_2] : memref<8x128xf32, #tpu.memory_space<vmem>>, vector<8x128xf32>
    %2 = vector.extract_strided_slice %0 {offsets = [0, 0], sizes = [4, 384], strides = [1, 1]} : vector<8x384xf32> to vector<4x384xf32>
    %3 = vector.extract_strided_slice %0 {offsets = [0, 0], sizes = [4, 384], strides = [1, 1]} : vector<8x384xf32> to vector<4x384xf32>
    %4 = arith.mulf %2, %3 : vector<4x384xf32>
    %5 = vector.extract_strided_slice %0 {offsets = [4, 0], sizes = [4, 384], strides = [1, 1]} : vector<8x384xf32> to vector<4x384xf32>
    %6 = vector.extract_strided_slice %0 {offsets = [4, 0], sizes = [4, 384], strides = [1, 1]} : vector<8x384xf32> to vector<4x384xf32>
    %7 = arith.mulf %5, %6 : vector<4x384xf32>
    %8 = arith.addf %4, %7 : vector<4x384xf32>
    %9 = vector.extract_strided_slice %1 {offsets = [0, 0], sizes = [4, 128], strides = [1, 1]} : vector<8x128xf32> to vector<4x128xf32>
    %10 = vector.extract_strided_slice %1 {offsets = [0, 0], sizes = [4, 128], strides = [1, 1]} : vector<8x128xf32> to vector<4x128xf32>
    %11 = arith.mulf %9, %10 : vector<4x128xf32>
    %12 = vector.extract_strided_slice %1 {offsets = [4, 0], sizes = [4, 128], strides = [1, 1]} : vector<8x128xf32> to vector<4x128xf32>
    %13 = vector.extract_strided_slice %1 {offsets = [4, 0], sizes = [4, 128], strides = [1, 1]} : vector<8x128xf32> to vector<4x128xf32>
    %14 = arith.mulf %12, %13 : vector<4x128xf32>
    %15 = arith.addf %11, %14 : vector<4x128xf32>
    %16 = tpu.concatenate %8, %15 in 1 : vector<4x384xf32>, vector<4x128xf32> -> vector<4x512xf32>
    %c0_3 = arith.constant 0 : index
    %c0_4 = arith.constant 0 : index
    %17 = vector.load %arg1[%c0_3, %c0_4] : memref<4x18xf32, #tpu.memory_space<vmem>>, vector<4x1xf32>
    %18 = vector.extract_strided_slice %16 {offsets = [0, 0], sizes = [4, 384], strides = [1, 1]} : vector<4x512xf32> to vector<4x384xf32>
    %19 = vector.broadcast %17 : vector<4x1xf32> to vector<4x384xf32>
    %20 = arith.mulf %19, %18 : vector<4x384xf32>
    %c0_5 = arith.constant 0 : index
    %c1 = arith.constant 1 : index
    %21 = vector.load %arg1[%c0_5, %c1] : memref<4x18xf32, #tpu.memory_space<vmem>>, vector<4x1xf32>
    %22 = vector.extract_strided_slice %16 {offsets = [0, 1], sizes = [4, 384], strides = [1, 1]} : vector<4x512xf32> to vector<4x384xf32>
    %23 = vector.broadcast %21 : vector<4x1xf32> to vector<4x384xf32>
    %24 = arith.mulf %23, %22 : vector<4x384xf32>
    %25 = arith.addf %20, %24 : vector<4x384xf32>
    %c0_6 = arith.constant 0 : index
    %c2 = arith.constant 2 : index
    %26 = vector.load %arg1[%c0_6, %c2] : memref<4x18xf32, #tpu.memory_space<vmem>>, vector<4x1xf32>
    %27 = vector.extract_strided_slice %16 {offsets = [0, 2], sizes = [4, 384], strides = [1, 1]} : vector<4x512xf32> to vector<4x384xf32>
    %28 = vector.broadcast %26 : vector<4x1xf32> to vector<4x384xf32>
    %29 = arith.mulf %28, %27 : vector<4x384xf32>
    %30 = arith.addf %25, %29 : vector<4x384xf32>
    %c0_7 = arith.constant 0 : index
    %c3 = arith.constant 3 : index
    %31 = vector.load %arg1[%c0_7, %c3] : memref<4x18xf32, #tpu.memory_space<vmem>>, vector<4x1xf32>
    %32 = vector.extract_strided_slice %16 {offsets = [0, 3], sizes = [4, 384], strides = [1, 1]} : vector<4x512xf32> to vector<4x384xf32>
    %33 = vector.broadcast %31 : vector<4x1xf32> to vector<4x384xf32>
    %34 = arith.mulf %33, %32 : vector<4x384xf32>
    %35 = arith.addf %30, %34 : vector<4x384xf32>
    %c0_8 = arith.constant 0 : index
    %c4 = arith.constant 4 : index
    %36 = vector.load %arg1[%c0_8, %c4] : memref<4x18xf32, #tpu.memory_space<vmem>>, vector<4x1xf32>
    %37 = vector.extract_strided_slice %16 {offsets = [0, 4], sizes = [4, 384], strides = [1, 1]} : vector<4x512xf32> to vector<4x384xf32>
    %38 = vector.broadcast %36 : vector<4x1xf32> to vector<4x384xf32>
    %39 = arith.mulf %38, %37 : vector<4x384xf32>
    %40 = arith.addf %35, %39 : vector<4x384xf32>
    %c0_9 = arith.constant 0 : index
    %c5 = arith.constant 5 : index
    %41 = vector.load %arg1[%c0_9, %c5] : memref<4x18xf32, #tpu.memory_space<vmem>>, vector<4x1xf32>
    %42 = vector.extract_strided_slice %16 {offsets = [0, 5], sizes = [4, 384], strides = [1, 1]} : vector<4x512xf32> to vector<4x384xf32>
    %43 = vector.broadcast %41 : vector<4x1xf32> to vector<4x384xf32>
    %44 = arith.mulf %43, %42 : vector<4x384xf32>
    %45 = arith.addf %40, %44 : vector<4x384xf32>
    %c0_10 = arith.constant 0 : index
    %c6 = arith.constant 6 : index
    %46 = vector.load %arg1[%c0_10, %c6] : memref<4x18xf32, #tpu.memory_space<vmem>>, vector<4x1xf32>
    %47 = vector.extract_strided_slice %16 {offsets = [0, 6], sizes = [4, 384], strides = [1, 1]} : vector<4x512xf32> to vector<4x384xf32>
    %48 = vector.broadcast %46 : vector<4x1xf32> to vector<4x384xf32>
    %49 = arith.mulf %48, %47 : vector<4x384xf32>
    %50 = arith.addf %45, %49 : vector<4x384xf32>
    %c0_11 = arith.constant 0 : index
    %c7 = arith.constant 7 : index
    %51 = vector.load %arg1[%c0_11, %c7] : memref<4x18xf32, #tpu.memory_space<vmem>>, vector<4x1xf32>
    %52 = vector.extract_strided_slice %16 {offsets = [0, 7], sizes = [4, 384], strides = [1, 1]} : vector<4x512xf32> to vector<4x384xf32>
    %53 = vector.broadcast %51 : vector<4x1xf32> to vector<4x384xf32>
    %54 = arith.mulf %53, %52 : vector<4x384xf32>
    %55 = arith.addf %50, %54 : vector<4x384xf32>
    %c0_12 = arith.constant 0 : index
    %c8 = arith.constant 8 : index
    %56 = vector.load %arg1[%c0_12, %c8] : memref<4x18xf32, #tpu.memory_space<vmem>>, vector<4x1xf32>
    %57 = vector.extract_strided_slice %16 {offsets = [0, 8], sizes = [4, 384], strides = [1, 1]} : vector<4x512xf32> to vector<4x384xf32>
    %58 = vector.broadcast %56 : vector<4x1xf32> to vector<4x384xf32>
    %59 = arith.mulf %58, %57 : vector<4x384xf32>
    %60 = arith.addf %55, %59 : vector<4x384xf32>
    %61 = vector.extract_strided_slice %16 {offsets = [2, 0], sizes = [2, 512], strides = [1, 1]} : vector<4x512xf32> to vector<2x512xf32>
    %62 = vector.extract_strided_slice %16 {offsets = [0, 0], sizes = [2, 512], strides = [1, 1]} : vector<4x512xf32> to vector<2x512xf32>
    %63 = tpu.concatenate %61, %62 in 0 : vector<2x512xf32>, vector<2x512xf32> -> vector<4x512xf32>
    %c0_13 = arith.constant 0 : index
    %c9 = arith.constant 9 : index
    %64 = vector.load %arg1[%c0_13, %c9] : memref<4x18xf32, #tpu.memory_space<vmem>>, vector<4x1xf32>
    %65 = vector.extract_strided_slice %63 {offsets = [0, 0], sizes = [4, 384], strides = [1, 1]} : vector<4x512xf32> to vector<4x384xf32>
    %66 = vector.broadcast %64 : vector<4x1xf32> to vector<4x384xf32>
    %67 = arith.mulf %66, %65 : vector<4x384xf32>
    %68 = arith.addf %60, %67 : vector<4x384xf32>
    %c0_14 = arith.constant 0 : index
    %c10 = arith.constant 10 : index
    %69 = vector.load %arg1[%c0_14, %c10] : memref<4x18xf32, #tpu.memory_space<vmem>>, vector<4x1xf32>
    %70 = vector.extract_strided_slice %63 {offsets = [0, 1], sizes = [4, 384], strides = [1, 1]} : vector<4x512xf32> to vector<4x384xf32>
    %71 = vector.broadcast %69 : vector<4x1xf32> to vector<4x384xf32>
    %72 = arith.mulf %71, %70 : vector<4x384xf32>
    %73 = arith.addf %68, %72 : vector<4x384xf32>
    %c0_15 = arith.constant 0 : index
    %c11 = arith.constant 11 : index
    %74 = vector.load %arg1[%c0_15, %c11] : memref<4x18xf32, #tpu.memory_space<vmem>>, vector<4x1xf32>
    %75 = vector.extract_strided_slice %63 {offsets = [0, 2], sizes = [4, 384], strides = [1, 1]} : vector<4x512xf32> to vector<4x384xf32>
    %76 = vector.broadcast %74 : vector<4x1xf32> to vector<4x384xf32>
    %77 = arith.mulf %76, %75 : vector<4x384xf32>
    %78 = arith.addf %73, %77 : vector<4x384xf32>
    %c0_16 = arith.constant 0 : index
    %c12 = arith.constant 12 : index
    %79 = vector.load %arg1[%c0_16, %c12] : memref<4x18xf32, #tpu.memory_space<vmem>>, vector<4x1xf32>
    %80 = vector.extract_strided_slice %63 {offsets = [0, 3], sizes = [4, 384], strides = [1, 1]} : vector<4x512xf32> to vector<4x384xf32>
    %81 = vector.broadcast %79 : vector<4x1xf32> to vector<4x384xf32>
    %82 = arith.mulf %81, %80 : vector<4x384xf32>
    %83 = arith.addf %78, %82 : vector<4x384xf32>
    %c0_17 = arith.constant 0 : index
    %c13 = arith.constant 13 : index
    %84 = vector.load %arg1[%c0_17, %c13] : memref<4x18xf32, #tpu.memory_space<vmem>>, vector<4x1xf32>
    %85 = vector.extract_strided_slice %63 {offsets = [0, 4], sizes = [4, 384], strides = [1, 1]} : vector<4x512xf32> to vector<4x384xf32>
    %86 = vector.broadcast %84 : vector<4x1xf32> to vector<4x384xf32>
    %87 = arith.mulf %86, %85 : vector<4x384xf32>
    %88 = arith.addf %83, %87 : vector<4x384xf32>
    %c0_18 = arith.constant 0 : index
    %c14 = arith.constant 14 : index
    %89 = vector.load %arg1[%c0_18, %c14] : memref<4x18xf32, #tpu.memory_space<vmem>>, vector<4x1xf32>
    %90 = vector.extract_strided_slice %63 {offsets = [0, 5], sizes = [4, 384], strides = [1, 1]} : vector<4x512xf32> to vector<4x384xf32>
    %91 = vector.broadcast %89 : vector<4x1xf32> to vector<4x384xf32>
    %92 = arith.mulf %91, %90 : vector<4x384xf32>
    %93 = arith.addf %88, %92 : vector<4x384xf32>
    %c0_19 = arith.constant 0 : index
    %c15 = arith.constant 15 : index
    %94 = vector.load %arg1[%c0_19, %c15] : memref<4x18xf32, #tpu.memory_space<vmem>>, vector<4x1xf32>
    %95 = vector.extract_strided_slice %63 {offsets = [0, 6], sizes = [4, 384], strides = [1, 1]} : vector<4x512xf32> to vector<4x384xf32>
    %96 = vector.broadcast %94 : vector<4x1xf32> to vector<4x384xf32>
    %97 = arith.mulf %96, %95 : vector<4x384xf32>
    %98 = arith.addf %93, %97 : vector<4x384xf32>
    %c0_20 = arith.constant 0 : index
    %c16 = arith.constant 16 : index
    %99 = vector.load %arg1[%c0_20, %c16] : memref<4x18xf32, #tpu.memory_space<vmem>>, vector<4x1xf32>
    %100 = vector.extract_strided_slice %63 {offsets = [0, 7], sizes = [4, 384], strides = [1, 1]} : vector<4x512xf32> to vector<4x384xf32>
    %101 = vector.broadcast %99 : vector<4x1xf32> to vector<4x384xf32>
    %102 = arith.mulf %101, %100 : vector<4x384xf32>
    %103 = arith.addf %98, %102 : vector<4x384xf32>
    %c0_21 = arith.constant 0 : index
    %c17 = arith.constant 17 : index
    %104 = vector.load %arg1[%c0_21, %c17] : memref<4x18xf32, #tpu.memory_space<vmem>>, vector<4x1xf32>
    %105 = vector.extract_strided_slice %63 {offsets = [0, 8], sizes = [4, 384], strides = [1, 1]} : vector<4x512xf32> to vector<4x384xf32>
    %106 = vector.broadcast %104 : vector<4x1xf32> to vector<4x384xf32>
    %107 = arith.mulf %106, %105 : vector<4x384xf32>
    %108 = arith.addf %103, %107 : vector<4x384xf32>
    %109 = math.cos %108 : vector<4x384xf32>
    %110 = math.sin %108 : vector<4x384xf32>
    %111 = vector.extract_strided_slice %0 {offsets = [0, 4], sizes = [8, 380], strides = [1, 1]} : vector<8x384xf32> to vector<8x380xf32>
    %112 = vector.extract_strided_slice %1 {offsets = [0, 0], sizes = [8, 4], strides = [1, 1]} : vector<8x128xf32> to vector<8x4xf32>
    %113 = tpu.concatenate %111, %112 in 1 : vector<8x380xf32>, vector<8x4xf32> -> vector<8x384xf32>
    %114 = vector.extract_strided_slice %113 {offsets = [0, 0], sizes = [4, 384], strides = [1, 1]} : vector<8x384xf32> to vector<4x384xf32>
    %115 = vector.extract_strided_slice %113 {offsets = [4, 0], sizes = [4, 384], strides = [1, 1]} : vector<8x384xf32> to vector<4x384xf32>
    %116 = arith.mulf %114, %109 : vector<4x384xf32>
    %117 = arith.mulf %115, %110 : vector<4x384xf32>
    %118 = arith.subf %116, %117 : vector<4x384xf32>
    %119 = arith.mulf %114, %110 : vector<4x384xf32>
    %120 = arith.mulf %115, %109 : vector<4x384xf32>
    %121 = arith.addf %119, %120 : vector<4x384xf32>
    %122 = tpu.concatenate %118, %121 in 0 : vector<4x384xf32>, vector<4x384xf32> -> vector<8x384xf32>
    %c0_22 = arith.constant 0 : index
    %c0_23 = arith.constant 0 : index
    %123 = vector.load %arg4[%c0_22, %c0_23] : memref<8x384xf32, #tpu.memory_space<vmem>>, vector<8x384xf32>
    tpu.vector_store %arg4[%c0_22, %c0_23], %122 {strides = array<i32>} : memref<8x384xf32, #tpu.memory_space<vmem>>, vector<8x384xf32>,
    return
  }
  func.func @transform_0(%arg0: i32) -> (i32, i32) {
    %c0_i32 = arith.constant 0 : i32
    %c0_i32_0 = arith.constant 0 : i32
    %c0_i32_1 = arith.constant 0 : i32
    return %c0_i32, %c0_i32_0 : i32, i32
  }
  func.func @transform_1(%arg0: i32) -> (i32, i32) {
    %c0_i32 = arith.constant 0 : i32
    %c0_i32_0 = arith.constant 0 : i32
    return %c0_i32, %arg0 : i32, i32
  }
  func.func @transform_2(%arg0: i32) -> (i32, i32) {
    %c1_i32 = arith.constant 1 : i32
    %0 = arith.addi %arg0, %c1_i32 : i32
    %c3_i32 = arith.constant 3 : i32
    %1 = arith.muli %0, %c3_i32 : i32
    %c0_i32 = arith.constant 0 : i32
    %c0_i32_0 = arith.constant 0 : i32
    return %c0_i32, %1 : i32, i32
  }
  func.func @transform_3(%arg0: i32) -> (i32, i32) {
    %c0_i32 = arith.constant 0 : i32
    %c0_i32_0 = arith.constant 0 : i32
    return %c0_i32, %arg0 : i32, i32
  }
}

</mosaic_0001>

<llo_original>
// kernel: tpu_custom_call.1
$region0: #{tpu_custom_call.1}
  #allocation0 [shape = 'u32[]', space=smem, size = 0x4, offset = 0x4, fixed_abs, tag = 'smem constant byte address 0x4 - core index']
  #allocation1 [shape = 'u32[144,128]{1,0:T(1,128)}', space=vmem, size = 0x12000, scoped, tag = 'internal scratch']
  %s0 = inlined_call_operand.hbm [shape: f32[4,18], index: 0, kind: input, shape index: {}]
  %s1 = inlined_call_operand.hbm [shape: f32[8,896], index: 1, kind: input, shape index: {}]
  %s2 = inlined_call_operand.hbm [shape: f32[8,896], index: 2, kind: input, shape index: {}]
  %s3 = inlined_call_operand.hbm [shape: f32[8,768], index: 3, kind: output, shape index: {}]
  %s4 = sld [smem:[#allocation0]]
  $region57: #{tpu_custom_call.1} parent=0
    _
  %s6 = ssub.s32 1, %s4
  %s7 = scalar_select 0, %s6, %s4
  $region1: #{tpu_custom_call.1} parent=0
    #allocation2 [shape = 'u8[2048]{0}', space=vmem, size = 0x800, scoped, tag = 'input window, operand 0, single buffered']
    #allocation3 [shape = 's32[2]{0}', space=sflag, size = 0x8, scoped, tag = 'scoped memory for tpu_custom_call.1']
    #allocation4 [shape = 's32[2]{0}', space=sflag, size = 0x8, scoped, tag = 'scoped memory for tpu_custom_call.1']
    #allocation5 [shape = 'u8[24576]{0}', space=vmem, size = 0x6000, scoped, tag = 'input window, operand 1']
    #allocation6 [shape = 's32[2]{0}', space=sflag, size = 0x8, scoped, tag = 'scoped memory for tpu_custom_call.1']
    #allocation7 [shape = 'u8[8192]{0}', space=vmem, size = 0x2000, scoped, tag = 'input window, operand 2']
    #allocation8 [shape = 'u8[24576]{0}', space=vmem, size = 0x6000, scoped, tag = 'output window, operand 0']
    %8 = vsyncpa [#allocation3], 0
    %9 = vsyncpa [#allocation6], 0
    %s10 = scalar_lea.sflag [#allocation6], 1
    %11 = vsyncpa %s10, 0
    %12 = vsyncpa [#allocation4], 0
    %s13 = scalar_lea.sflag [#allocation4], 1
    %14 = vsyncpa %s13, 0
    loop: start=0, step=1, limit=4
    $region2: #{tpu_custom_call.1} parent=1 // loop_pre_header
      _
    $region3: #{tpu_custom_call.1} parent=1 // loop_header
      %s16 = sphi 0, %s20
      %p17 = scmp.ge.s32.totalorder %s16, 4
      %s24 = sphi 0, %s24
      %s26 = sphi 0, %s24
      %s27 = sphi 0, %s26
      %s41 = sphi 0, %s27
      %s47 = sphi 0, %s49
      %s50 = sphi 0, %s47
      %s51 = sphi 0, %s50
      %s67 = sphi 0, %s51
      %s77 = sphi 0, %s79
      %s80 = sphi 0, %s77
      %s81 = sphi 0, %s80
      %s97 = sphi 0, %s81
      %s103 = sphi 0, %s105
      %s106 = sphi 0, %s103
      %s107 = sphi 0, %s106
      %s123 = sphi 0, %s107
    $region4: #{tpu_custom_call.1} parent=1 // loop_header_branch
      %19 = sbr.rel (%p17) target = $region8
    $region5: #{tpu_custom_call.1} parent=1 // loop_body
      %s21 = ssub.s32 %s16, 1
      %s22 = ssub.s32 %s16, 2
      %s23 = sadd.s32 %s16, 1
      %s25 = sadd.s32 %s24, 1
      %p28 = scmp.eq.s32.totalorder %s16, 1
      %p29 = scmp.ne.s32.totalorder %s24, %s26
      %p30 = scmp.eq.s32.totalorder %s16, 0
      %p31 = por %p29, %p30
      %p32 = scmp.ne.s32.totalorder %s24, %s26
      %p33 = scmp.eq.s32.totalorder %s21, 1
      %p34 = por %p32, %p33
      %p35 = scmp.ne.s32.totalorder %s26, %s27
      %p36 = scmp.eq.s32.totalorder %s21, 0
      %p37 = por %p35, %p36
      %p38 = scmp.ne.s32.totalorder %s26, %s27
      %p39 = scmp.eq.s32.totalorder %s22, 1
      %p40 = por %p38, %p39
      %p42 = scmp.ne.s32.totalorder %s27, %s41
      %p43 = scmp.eq.s32.totalorder %s22, 0
      %p44 = por %p42, %p43
      %s45 = ssub.s32 %s16, %s23
      %p46 = scmp.eq.s32.totalorder %s45, 0
      %s48 = sadd.s32 %s47, 1
      %s49 = scalar_select %p46, %s47, %s48
      %p52 = pneg %p46
      %p53 = scmp.eq.s32.totalorder %s16, 1
      %p54 = por %p52, %p53
      %p55 = scmp.ne.s32.totalorder %s47, %s50
      %p56 = scmp.eq.s32.totalorder %s16, 0
      %p57 = por %p55, %p56
      %p58 = scmp.ne.s32.totalorder %s47, %s50
      %p59 = scmp.eq.s32.totalorder %s21, 1
      %p60 = por %p58, %p59
      %p61 = scmp.ne.s32.totalorder %s50, %s51
      %p62 = scmp.eq.s32.totalorder %s21, 0
      %p63 = por %p61, %p62
      %p64 = scmp.ne.s32.totalorder %s50, %s51
      %p65 = scmp.eq.s32.totalorder %s22, 1
      %p66 = por %p64, %p65
      %p68 = scmp.ne.s32.totalorder %s51, %s67
      %p69 = scmp.eq.s32.totalorder %s22, 0
      %p70 = por %p68, %p69
      %s71 = sadd.s32 %s16, 1
      %s72 = smul.u32 %s71, 3
      %s73 = sadd.s32 %s23, 1
      %s74 = smul.u32 %s73, 3
      %s75 = ssub.s32 %s72, %s74
      %p76 = scmp.eq.s32.totalorder %s75, 0
      %s78 = sadd.s32 %s77, 1
      %s79 = scalar_select %p76, %s77, %s78
      %p82 = pneg %p76
      %p83 = scmp.eq.s32.totalorder %s16, 1
      %p84 = por %p82, %p83
      %p85 = scmp.ne.s32.totalorder %s77, %s80
      %p86 = scmp.eq.s32.totalorder %s16, 0
      %p87 = por %p85, %p86
      %p88 = scmp.ne.s32.totalorder %s77, %s80
      %p89 = scmp.eq.s32.totalorder %s21, 1
      %p90 = por %p88, %p89
      %p91 = scmp.ne.s32.totalorder %s80, %s81
      %p92 = scmp.eq.s32.totalorder %s21, 0
      %p93 = por %p91, %p92
      %p94 = scmp.ne.s32.totalorder %s80, %s81
      %p95 = scmp.eq.s32.totalorder %s22, 1
      %p96 = por %p94, %p95
      %p98 = scmp.ne.s32.totalorder %s81, %s97
      %p99 = scmp.eq.s32.totalorder %s22, 0
      %p100 = por %p98, %p99
      %s101 = ssub.s32 %s16, %s23
      %p102 = scmp.eq.s32.totalorder %s101, 0
      %s104 = sadd.s32 %s103, 1
      %s105 = scalar_select %p102, %s103, %s104
      %p108 = pneg %p102
      %p109 = scmp.eq.s32.totalorder %s16, 1
      %p110 = por %p108, %p109
      %p111 = scmp.ne.s32.totalorder %s103, %s106
      %p112 = scmp.eq.s32.totalorder %s16, 0
      %p113 = por %p111, %p112
      %p114 = scmp.ne.s32.totalorder %s103, %s106
      %p115 = scmp.eq.s32.totalorder %s21, 1
      %p116 = por %p114, %p115
      %p117 = scmp.ne.s32.totalorder %s106, %s107
      %p118 = scmp.eq.s32.totalorder %s21, 0
      %p119 = por %p117, %p118
      %p120 = scmp.ne.s32.totalorder %s106, %s107
      %p121 = scmp.eq.s32.totalorder %s22, 1
      %p122 = por %p120, %p121
      %p124 = scmp.ne.s32.totalorder %s107, %s123
      %p125 = scmp.eq.s32.totalorder %s22, 0
      %p126 = por %p124, %p125
      %p127 = scmp.le.s32.totalorder 1, %s16
      %p128 = scmp.lt.s32.totalorder %s16, 3
      %p129 = pnand %p127, %p128
      %p130 = pneg %p129
      // Predicated region
      $region9: #{tpu_custom_call.1} parent=5 // pred_check
        _
      $region10: #{tpu_custom_call.1} parent=5 // pred_check_branch
        %132 = sbr.rel (%p129) target = $region12
      $region11: #{tpu_custom_call.1} parent=5 // pred_region
        %s133 = ssub.s32 %s16, 1
        // Predicated region
        $region13: #{tpu_custom_call.1} parent=11 // pred_check
          %p134 = pneg %p37
        $region14: #{tpu_custom_call.1} parent=11 // pred_check_branch
          %136 = sbr.rel (%p134) target = $region16
        $region15: #{tpu_custom_call.1} parent=11 // pred_region
          %s138 = ssub.s32 64, 64
          %139 = vsyncadd [#allocation3], %s138
          %s141 = sshll.u32 [#allocation2], 4
          %s142 = int_to_ptr.vmem [resolvable:$true] %s141
          %144 = dma.hbm_to_vmem [thread:$0]  %s0, 64, %s142, [#allocation3]
        $region16: #{tpu_custom_call.1} parent=11 // pred_fallthru
          _
      $region12: #{tpu_custom_call.1} parent=5 // pred_fallthru
        _
      %p145 = scmp.lt.s32.totalorder %s16, 2
      // Predicated region
      $region17: #{tpu_custom_call.1} parent=5 // pred_check
        %p146 = pneg %p145
      $region18: #{tpu_custom_call.1} parent=5 // pred_check_branch
        %148 = sbr.rel (%p146) target = $region20
      $region19: #{tpu_custom_call.1} parent=5 // pred_region
        // Predicated region
        $region21: #{tpu_custom_call.1} parent=19 // pred_check
          %p149 = pneg %p57
        $region22: #{tpu_custom_call.1} parent=19 // pred_check_branch
          %151 = sbr.rel (%p149) target = $region24
        $region23: #{tpu_custom_call.1} parent=19 // pred_region
          %s152 = sand.u32 %s16, 1
          %s153 = scalar_lea.sflag [#allocation6], %s152
          %s154 = sand.u32 %s47, 1
          %s155 = smul.addr %s154, 24
          %s156 = scalar_lea.vmem [#allocation5], %s155
          %s157 = smul.u32 3, %s16
          %s158 = ssub.s32 7, %s157
          %p159 = scmp.lt.s32.totalorder %s158, 3
          %s160 = scalar_select %p159, %s158, 3
          %s161 = smul.u32 128, %s160
          %s163 = ssub.s32 384, %s161
          %164 = vsyncadd %s153, %s163
          %p165 = scmp.ne.s32.totalorder 0, %s161
          %s166 = smul.addr %s157, 128
          %s167 = scalar_lea.hbm %s1, %s166
          %s168 = smul.u32 %s160, 8
          %s169 = sshll.u32 %s168, 4
          %s170 = sshll.u32 %s156, 4
          %s171 = int_to_ptr.vmem [resolvable:$true] %s170
          %173 = dma.hbm_to_vmem [thread:$0]  (%p165), %s167, %s169, %s171, %s153
        $region24: #{tpu_custom_call.1} parent=19 // pred_fallthru
          _
        // Predicated region
        $region25: #{tpu_custom_call.1} parent=19 // pred_check
          %p174 = pneg %p87
        $region26: #{tpu_custom_call.1} parent=19 // pred_check_branch
          %176 = sbr.rel (%p174) target = $region28
        $region27: #{tpu_custom_call.1} parent=19 // pred_region
          %s177 = sand.u32 %s16, 1
          %s178 = scalar_lea.sflag [#allocation6], %s177
          %s179 = sand.u32 %s77, 1
          %s180 = smul.addr %s179, 8
          %s181 = scalar_lea.vmem [#allocation7], %s180
          %s182 = sadd.s32 %s16, 1
          %s183 = smul.u32 %s182, 3
          %s185 = ssub.s32 128, 128
          %186 = vsyncadd %s178, %s185
          %s187 = smul.addr %s183, 128
          %s188 = scalar_lea.hbm %s2, %s187
          %s190 = sshll.u32 %s181, 4
          %s191 = int_to_ptr.vmem [resolvable:$true] %s190
          %193 = dma.hbm_to_vmem [thread:$0]  %s188, 128, %s191, %s178
        $region28: #{tpu_custom_call.1} parent=19 // pred_fallthru
          _
      $region20: #{tpu_custom_call.1} parent=5 // pred_fallthru
        _
      %p194 = scmp.le.s32.totalorder 1, %s16
      %p195 = scmp.lt.s32.totalorder %s16, 3
      %p196 = pnand %p194, %p195
      %p197 = pneg %p196
      // Predicated region
      $region29: #{tpu_custom_call.1} parent=5 // pred_check
        _
      $region30: #{tpu_custom_call.1} parent=5 // pred_check_branch
        %199 = sbr.rel (%p196) target = $region32
      $region31: #{tpu_custom_call.1} parent=5 // pred_region
        %s200 = ssub.s32 %s16, 1
        // Predicated region
        $region33: #{tpu_custom_call.1} parent=31 // pred_check
          %p201 = pneg %p37
        $region34: #{tpu_custom_call.1} parent=31 // pred_check_branch
          %203 = sbr.rel (%p201) target = $region36
        $region35: #{tpu_custom_call.1} parent=31 // pred_region
          %204 = dma.done [#allocation3], 64
        $region36: #{tpu_custom_call.1} parent=31 // pred_fallthru
          _
        %s205 = sand.u32 %s21, 1
        %s206 = scalar_lea.sflag [#allocation6], %s205
        %s207 = sand.u32 %s50, 1
        %s208 = smul.addr %s207, 24
        %s209 = scalar_lea.vmem [#allocation5], %s208
        // Predicated region
        $region37: #{tpu_custom_call.1} parent=31 // pred_check
          %p210 = pneg %p63
        $region38: #{tpu_custom_call.1} parent=31 // pred_check_branch
          %212 = sbr.rel (%p210) target = $region40
        $region39: #{tpu_custom_call.1} parent=31 // pred_region
          %213 = dma.done %s206, 384
        $region40: #{tpu_custom_call.1} parent=31 // pred_fallthru
          _
        %s214 = sand.u32 %s21, 1
        %s215 = scalar_lea.sflag [#allocation6], %s214
        %s216 = sand.u32 %s80, 1
        %s217 = smul.addr %s216, 8
        %s218 = scalar_lea.vmem [#allocation7], %s217
        // Predicated region
        $region41: #{tpu_custom_call.1} parent=31 // pred_check
          %p219 = pneg %p93
        $region42: #{tpu_custom_call.1} parent=31 // pred_check_branch
          %221 = sbr.rel (%p219) target = $region44
        $region43: #{tpu_custom_call.1} parent=31 // pred_region
          %222 = dma.done %s215, 128
        $region44: #{tpu_custom_call.1} parent=31 // pred_fallthru
          _
        %p223 = pneg %p37
        %p224 = pneg %p34
        %s225 = sand.u32 %s21, 1
        %s226 = scalar_lea.sflag [#allocation6], %s225
        %s227 = sand.u32 %s50, 1
        %s228 = smul.addr %s227, 24
        %s229 = scalar_lea.vmem [#allocation5], %s228
        %p230 = pneg %p63
        %p231 = pneg %p60
        %s232 = sand.u32 %s21, 1
        %s233 = scalar_lea.sflag [#allocation6], %s232
        %s234 = sand.u32 %s80, 1
        %s235 = smul.addr %s234, 8
        %s236 = scalar_lea.vmem [#allocation7], %s235
        %p237 = pneg %p93
        %p238 = pneg %p90
        %p239 = pneg %p119
        %p240 = pneg %p116
        %s241 = sand.u32 %s106, 1
        %s242 = scalar_lea.sflag [#allocation4], %s241
        %s243 = sand.u32 %s106, 1
        %s244 = smul.addr %s243, 24
        %s245 = scalar_lea.vmem [#allocation8], %s244
        %s246 = smul.u32 3, %s21
        %s247 = ssub.s32 7, %s246
        %p248 = scmp.lt.s32.totalorder %s247, 3
        %s249 = scalar_select %p248, %s247, 3
        %s250 = smul.u32 128, %s249
        %s251 = sadd.s32 %s21, 1
        %s252 = smul.u32 %s251, 3
        %s253 = smul.u32 3, %s21
        %v254 = vld [vmem:[%s209] sm:$0xff]
        %v255 = vld [vmem:[%s209 + $0x8] sm:$0xff]
        %v256 = vld [vmem:[%s209 + $0x10] sm:$0xff]
        %v257 = vld [vmem:[%s218] sm:$0xff]
        %v258 = vmul.f32 %v254, %v254
        %v259 = vmul.f32 %v255, %v255
        %v260 = vmul.f32 %v256, %v256
        %v264 = vrot.slane %v258, 4
        %v265 = vrot.slane %v259, 4
        %v266 = vrot.slane %v260, 4
        %v270 = vadd.f32 %v258, %v264
        %v271 = vadd.f32 %v259, %v265
        %v272 = vadd.f32 %v260, %v266
        %v273 = vmul.f32 %v257, %v257
        %v275 = vrot.slane %v273, 4
        %v277 = vadd.f32 %v273, %v275
        %v278 = vld [vmem:[#allocation2] sm:$0xf]
        %280 = vset.pattern.permute.xlu0 0
        %281 = vperm.xlu0 %280, %v278
        %v282 = vpop.permute.xlu0 %281
        %v284 = vmul.f32 %v282, %v270
        %v285 = vmul.f32 %v282, %v271
        %v286 = vmul.f32 %v282, %v272
        %287 = vset.pattern.permute.xlu0 1
        %288 = vperm.xlu0 %287, %v278
        %v289 = vpop.permute.xlu0 %288
        %v291 = vmul.f32 %v289, %v270
        %v292 = vmul.f32 %v289, %v271
        %v293 = vmul.f32 %v289, %v272
        %v294 = vmul.f32 %v289, %v277
        %299 = vrot.lane.b32.xlu0 %v291, 127
        %v300 = vpop.permute.xlu0 %299
        %301 = vrot.lane.b32.xlu0 %v292, 127
        %v302 = vpop.permute.xlu0 %301
        %303 = vrot.lane.b32.xlu0 %v293, 127
        %v304 = vpop.permute.xlu0 %303
        %305 = vrot.lane.b32.xlu0 %v294, 127
        %v306 = vpop.permute.xlu0 %305
        %vm307 = vcmask 1039360
        %v308 = vsel %vm307, %v300, %v302
        %v309 = vsel %vm307, %v302, %v304
        %v310 = vsel %vm307, %v304, %v306
        %v314 = vadd.f32 %v284, %v308
        %v315 = vadd.f32 %v285, %v309
        %v316 = vadd.f32 %v286, %v310
        %317 = vset.pattern.permute.xlu0 2
        %318 = vperm.xlu0 %317, %v278
        %v319 = vpop.permute.xlu0 %318
        %v321 = vmul.f32 %v319, %v270
        %v322 = vmul.f32 %v319, %v271
        %v323 = vmul.f32 %v319, %v272
        %v324 = vmul.f32 %v319, %v277
        %329 = vrot.lane.b32.xlu0 %v321, 126
        %v330 = vpop.permute.xlu0 %329
        %331 = vrot.lane.b32.xlu0 %v322, 126
        %v332 = vpop.permute.xlu0 %331
        %333 = vrot.lane.b32.xlu0 %v323, 126
        %v334 = vpop.permute.xlu0 %333
        %335 = vrot.lane.b32.xlu0 %v324, 126
        %v336 = vpop.permute.xlu0 %335
        %vm337 = vcmask 1031168
        %v338 = vsel %vm337, %v330, %v332
        %v339 = vsel %vm337, %v332, %v334
        %v340 = vsel %vm337, %v334, %v336
        %v344 = vadd.f32 %v314, %v338
        %v345 = vadd.f32 %v315, %v339
        %v346 = vadd.f32 %v316, %v340
        %347 = vset.pattern.permute.xlu0 3
        %348 = vperm.xlu0 %347, %v278
        %v349 = vpop.permute.xlu0 %348
        %v351 = vmul.f32 %v349, %v270
        %v352 = vmul.f32 %v349, %v271
        %v353 = vmul.f32 %v349, %v272
        %v354 = vmul.f32 %v349, %v277
        %359 = vrot.lane.b32.xlu0 %v351, 125
        %v360 = vpop.permute.xlu0 %359
        %361 = vrot.lane.b32.xlu0 %v352, 125
        %v362 = vpop.permute.xlu0 %361
        %363 = vrot.lane.b32.xlu0 %v353, 125
        %v364 = vpop.permute.xlu0 %363
        %365 = vrot.lane.b32.xlu0 %v354, 125
        %v366 = vpop.permute.xlu0 %365
        %vm367 = vcmask 1022976
        %v368 = vsel %vm367, %v360, %v362
        %v369 = vsel %vm367, %v362, %v364
        %v370 = vsel %vm367, %v364, %v366
        %v374 = vadd.f32 %v344, %v368
        %v375 = vadd.f32 %v345, %v369
        %v376 = vadd.f32 %v346, %v370
        %377 = vset.pattern.permute.xlu0 4
        %378 = vperm.xlu0 %377, %v278
        %v379 = vpop.permute.xlu0 %378
        %v381 = vmul.f32 %v379, %v270
        %v382 = vmul.f32 %v379, %v271
        %v383 = vmul.f32 %v379, %v272
        %v384 = vmul.f32 %v379, %v277
        %389 = vrot.lane.b32.xlu0 %v381, 124
        %v390 = vpop.permute.xlu0 %389
        %391 = vrot.lane.b32.xlu0 %v382, 124
        %v392 = vpop.permute.xlu0 %391
        %393 = vrot.lane.b32.xlu0 %v383, 124
        %v394 = vpop.permute.xlu0 %393
        %395 = vrot.lane.b32.xlu0 %v384, 124
        %v396 = vpop.permute.xlu0 %395
        %vm397 = vcmask 1014784
        %v398 = vsel %vm397, %v390, %v392
        %v399 = vsel %vm397, %v392, %v394
        %v400 = vsel %vm397, %v394, %v396
        %v404 = vadd.f32 %v374, %v398
        %v405 = vadd.f32 %v375, %v399
        %v406 = vadd.f32 %v376, %v400
        %407 = vset.pattern.permute.xlu0 5
        %408 = vperm.xlu0 %407, %v278
        %v409 = vpop.permute.xlu0 %408
        %v411 = vmul.f32 %v409, %v270
        %v412 = vmul.f32 %v409, %v271
        %v413 = vmul.f32 %v409, %v272
        %v414 = vmul.f32 %v409, %v277
        %419 = vrot.lane.b32.xlu0 %v411, 123
        %v420 = vpop.permute.xlu0 %419
        %421 = vrot.lane.b32.xlu0 %v412, 123
        %v422 = vpop.permute.xlu0 %421
        %423 = vrot.lane.b32.xlu0 %v413, 123
        %v424 = vpop.permute.xlu0 %423
        %425 = vrot.lane.b32.xlu0 %v414, 123
        %v426 = vpop.permute.xlu0 %425
        %vm427 = vcmask 1006592
        %v428 = vsel %vm427, %v420, %v422
        %v429 = vsel %vm427, %v422, %v424
        %v430 = vsel %vm427, %v424, %v426
        %v434 = vadd.f32 %v404, %v428
        %v435 = vadd.f32 %v405, %v429
        %v436 = vadd.f32 %v406, %v430
        %437 = vset.pattern.permute.xlu0 6
        %438 = vperm.xlu0 %437, %v278
        %v439 = vpop.permute.xlu0 %438
        %v441 = vmul.f32 %v439, %v270
        %v442 = vmul.f32 %v439, %v271
        %v443 = vmul.f32 %v439, %v272
        %v444 = vmul.f32 %v439, %v277
        %449 = vrot.lane.b32.xlu0 %v441, 122
        %v450 = vpop.permute.xlu0 %449
        %451 = vrot.lane.b32.xlu0 %v442, 122
        %v452 = vpop.permute.xlu0 %451
        %453 = vrot.lane.b32.xlu0 %v443, 122
        %v454 = vpop.permute.xlu0 %453
        %455 = vrot.lane.b32.xlu0 %v444, 122
        %v456 = vpop.permute.xlu0 %455
        %vm457 = vcmask 998400
        %v458 = vsel %vm457, %v450, %v452
        %v459 = vsel %vm457, %v452, %v454
        %v460 = vsel %vm457, %v454, %v456
        %v464 = vadd.f32 %v434, %v458
        %v465 = vadd.f32 %v435, %v459
        %v466 = vadd.f32 %v436, %v460
        %467 = vset.pattern.permute.xlu0 7
        %468 = vperm.xlu0 %467, %v278
        %v469 = vpop.permute.xlu0 %468
        %v471 = vmul.f32 %v469, %v270
        %v472 = vmul.f32 %v469, %v271
        %v473 = vmul.f32 %v469, %v272
        %v474 = vmul.f32 %v469, %v277
        %479 = vrot.lane.b32.xlu0 %v471, 121
        %v480 = vpop.permute.xlu0 %479
        %481 = vrot.lane.b32.xlu0 %v472, 121
        %v482 = vpop.permute.xlu0 %481
        %483 = vrot.lane.b32.xlu0 %v473, 121
        %v484 = vpop.permute.xlu0 %483
        %485 = vrot.lane.b32.xlu0 %v474, 121
        %v486 = vpop.permute.xlu0 %485
        %vm487 = vcmask 990208
        %v488 = vsel %vm487, %v480, %v482
        %v489 = vsel %vm487, %v482, %v484
        %v490 = vsel %vm487, %v484, %v486
        %v494 = vadd.f32 %v464, %v488
        %v495 = vadd.f32 %v465, %v489
        %v496 = vadd.f32 %v466, %v490
        %497 = vset.pattern.permute.xlu0 8
        %498 = vperm.xlu0 %497, %v278
        %v499 = vpop.permute.xlu0 %498
        %v501 = vmul.f32 %v499, %v270
        %v502 = vmul.f32 %v499, %v271
        %v503 = vmul.f32 %v499, %v272
        %v504 = vmul.f32 %v499, %v277
        %509 = vrot.lane.b32.xlu0 %v501, 120
        %v510 = vpop.permute.xlu0 %509
        %511 = vrot.lane.b32.xlu0 %v502, 120
        %v512 = vpop.permute.xlu0 %511
        %513 = vrot.lane.b32.xlu0 %v503, 120
        %v514 = vpop.permute.xlu0 %513
        %515 = vrot.lane.b32.xlu0 %v504, 120
        %v516 = vpop.permute.xlu0 %515
        %vm517 = vcmask 982016
        %v518 = vsel %vm517, %v510, %v512
        %v519 = vsel %vm517, %v512, %v514
        %v520 = vsel %vm517, %v514, %v516
        %v524 = vadd.f32 %v494, %v518
        %v525 = vadd.f32 %v495, %v519
        %v526 = vadd.f32 %v496, %v520
        %v531 = vrot.slane %v270, 2
        %v532 = vrot.slane %v271, 2
        %v533 = vrot.slane %v272, 2
        %v534 = vrot.slane %v277, 2
        %v539 = vrot.slane %v270, 6
        %v540 = vrot.slane %v271, 6
        %v541 = vrot.slane %v272, 6
        %v542 = vrot.slane %v277, 6
        %vm547 = vcmask 1041408
        %v548 = vsel %vm547, %v531, %v539
        %v549 = vsel %vm547, %v532, %v540
        %v550 = vsel %vm547, %v533, %v541
        %v551 = vsel %vm547, %v534, %v542
        %552 = vset.pattern.permute.xlu0 9
        %553 = vperm.xlu0 %552, %v278
        %v554 = vpop.permute.xlu0 %553
        %v556 = vmul.f32 %v554, %v548
        %v557 = vmul.f32 %v554, %v549
        %v558 = vmul.f32 %v554, %v550
        %v559 = vadd.f32 %v524, %v556
        %v560 = vadd.f32 %v525, %v557
        %v561 = vadd.f32 %v526, %v558
        %562 = vset.pattern.permute.xlu0 10
        %563 = vperm.xlu0 %562, %v278
        %v564 = vpop.permute.xlu0 %563
        %v566 = vmul.f32 %v564, %v548
        %v567 = vmul.f32 %v564, %v549
        %v568 = vmul.f32 %v564, %v550
        %v569 = vmul.f32 %v564, %v551
        %574 = vrot.lane.b32.xlu0 %v566, 127
        %v575 = vpop.permute.xlu0 %574
        %576 = vrot.lane.b32.xlu0 %v567, 127
        %v577 = vpop.permute.xlu0 %576
        %578 = vrot.lane.b32.xlu0 %v568, 127
        %v579 = vpop.permute.xlu0 %578
        %580 = vrot.lane.b32.xlu0 %v569, 127
        %v581 = vpop.permute.xlu0 %580
        %v582 = vsel %vm307, %v575, %v577
        %v583 = vsel %vm307, %v577, %v579
        %v584 = vsel %vm307, %v579, %v581
        %v588 = vadd.f32 %v559, %v582
        %v589 = vadd.f32 %v560, %v583
        %v590 = vadd.f32 %v561, %v584
        %591 = vset.pattern.permute.xlu0 11
        %592 = vperm.xlu0 %591, %v278
        %v593 = vpop.permute.xlu0 %592
        %v595 = vmul.f32 %v593, %v548
        %v596 = vmul.f32 %v593, %v549
        %v597 = vmul.f32 %v593, %v550
        %v598 = vmul.f32 %v593, %v551
        %603 = vrot.lane.b32.xlu0 %v595, 126
        %v604 = vpop.permute.xlu0 %603
        %605 = vrot.lane.b32.xlu0 %v596, 126
        %v606 = vpop.permute.xlu0 %605
        %607 = vrot.lane.b32.xlu0 %v597, 126
        %v608 = vpop.permute.xlu0 %607
        %609 = vrot.lane.b32.xlu0 %v598, 126
        %v610 = vpop.permute.xlu0 %609
        %v611 = vsel %vm337, %v604, %v606
        %v612 = vsel %vm337, %v606, %v608
        %v613 = vsel %vm337, %v608, %v610
        %v617 = vadd.f32 %v588, %v611
        %v618 = vadd.f32 %v589, %v612
        %v619 = vadd.f32 %v590, %v613
        %620 = vset.pattern.permute.xlu0 12
        %621 = vperm.xlu0 %620, %v278
        %v622 = vpop.permute.xlu0 %621
        %v624 = vmul.f32 %v622, %v548
        %v625 = vmul.f32 %v622, %v549
        %v626 = vmul.f32 %v622, %v550
        %v627 = vmul.f32 %v622, %v551
        %632 = vrot.lane.b32.xlu0 %v624, 125
        %v633 = vpop.permute.xlu0 %632
        %634 = vrot.lane.b32.xlu0 %v625, 125
        %v635 = vpop.permute.xlu0 %634
        %636 = vrot.lane.b32.xlu0 %v626, 125
        %v637 = vpop.permute.xlu0 %636
        %638 = vrot.lane.b32.xlu0 %v627, 125
        %v639 = vpop.permute.xlu0 %638
        %v640 = vsel %vm367, %v633, %v635
        %v641 = vsel %vm367, %v635, %v637
        %v642 = vsel %vm367, %v637, %v639
        %v646 = vadd.f32 %v617, %v640
        %v647 = vadd.f32 %v618, %v641
        %v648 = vadd.f32 %v619, %v642
        %649 = vset.pattern.permute.xlu0 13
        %650 = vperm.xlu0 %649, %v278
        %v651 = vpop.permute.xlu0 %650
        %v653 = vmul.f32 %v651, %v548
        %v654 = vmul.f32 %v651, %v549
        %v655 = vmul.f32 %v651, %v550
        %v656 = vmul.f32 %v651, %v551
        %661 = vrot.lane.b32.xlu0 %v653, 124
        %v662 = vpop.permute.xlu0 %661
        %663 = vrot.lane.b32.xlu0 %v654, 124
        %v664 = vpop.permute.xlu0 %663
        %665 = vrot.lane.b32.xlu0 %v655, 124
        %v666 = vpop.permute.xlu0 %665
        %667 = vrot.lane.b32.xlu0 %v656, 124
        %v668 = vpop.permute.xlu0 %667
        %v669 = vsel %vm397, %v662, %v664
        %v670 = vsel %vm397, %v664, %v666
        %v671 = vsel %vm397, %v666, %v668
        %v675 = vadd.f32 %v646, %v669
        %v676 = vadd.f32 %v647, %v670
        %v677 = vadd.f32 %v648, %v671
        %678 = vset.pattern.permute.xlu0 14
        %679 = vperm.xlu0 %678, %v278
        %v680 = vpop.permute.xlu0 %679
        %v682 = vmul.f32 %v680, %v548
        %v683 = vmul.f32 %v680, %v549
        %v684 = vmul.f32 %v680, %v550
        %v685 = vmul.f32 %v680, %v551
        %690 = vrot.lane.b32.xlu0 %v682, 123
        %v691 = vpop.permute.xlu0 %690
        %692 = vrot.lane.b32.xlu0 %v683, 123
        %v693 = vpop.permute.xlu0 %692
        %694 = vrot.lane.b32.xlu0 %v684, 123
        %v695 = vpop.permute.xlu0 %694
        %696 = vrot.lane.b32.xlu0 %v685, 123
        %v697 = vpop.permute.xlu0 %696
        %v698 = vsel %vm427, %v691, %v693
        %v699 = vsel %vm427, %v693, %v695
        %v700 = vsel %vm427, %v695, %v697
        %v704 = vadd.f32 %v675, %v698
        %v705 = vadd.f32 %v676, %v699
        %v706 = vadd.f32 %v677, %v700
        %707 = vset.pattern.permute.xlu0 15
        %708 = vperm.xlu0 %707, %v278
        %v709 = vpop.permute.xlu0 %708
        %v711 = vmul.f32 %v709, %v548
        %v712 = vmul.f32 %v709, %v549
        %v713 = vmul.f32 %v709, %v550
        %v714 = vmul.f32 %v709, %v551
        %719 = vrot.lane.b32.xlu0 %v711, 122
        %v720 = vpop.permute.xlu0 %719
        %721 = vrot.lane.b32.xlu0 %v712, 122
        %v722 = vpop.permute.xlu0 %721
        %723 = vrot.lane.b32.xlu0 %v713, 122
        %v724 = vpop.permute.xlu0 %723
        %725 = vrot.lane.b32.xlu0 %v714, 122
        %v726 = vpop.permute.xlu0 %725
        %v727 = vsel %vm457, %v720, %v722
        %v728 = vsel %vm457, %v722, %v724
        %v729 = vsel %vm457, %v724, %v726
        %v733 = vadd.f32 %v704, %v727
        %v734 = vadd.f32 %v705, %v728
        %v735 = vadd.f32 %v706, %v729
        %736 = vset.pattern.permute.xlu0 16
        %737 = vperm.xlu0 %736, %v278
        %v738 = vpop.permute.xlu0 %737
        %v740 = vmul.f32 %v738, %v548
        %v741 = vmul.f32 %v738, %v549
        %v742 = vmul.f32 %v738, %v550
        %v743 = vmul.f32 %v738, %v551
        %748 = vrot.lane.b32.xlu0 %v740, 121
        %v749 = vpop.permute.xlu0 %748
        %750 = vrot.lane.b32.xlu0 %v741, 121
        %v751 = vpop.permute.xlu0 %750
        %752 = vrot.lane.b32.xlu0 %v742, 121
        %v753 = vpop.permute.xlu0 %752
        %754 = vrot.lane.b32.xlu0 %v743, 121
        %v755 = vpop.permute.xlu0 %754
        %v756 = vsel %vm487, %v749, %v751
        %v757 = vsel %vm487, %v751, %v753
        %v758 = vsel %vm487, %v753, %v755
        %v762 = vadd.f32 %v733, %v756
        %v763 = vadd.f32 %v734, %v757
        %v764 = vadd.f32 %v735, %v758
        %765 = vset.pattern.permute.xlu0 17
        %766 = vperm.xlu0 %765, %v278
        %v767 = vpop.permute.xlu0 %766
        %v769 = vmul.f32 %v767, %v548
        %v770 = vmul.f32 %v767, %v549
        %v771 = vmul.f32 %v767, %v550
        %v772 = vmul.f32 %v767, %v551
        %777 = vrot.lane.b32.xlu0 %v769, 120
        %v778 = vpop.permute.xlu0 %777
        %779 = vrot.lane.b32.xlu0 %v770, 120
        %v780 = vpop.permute.xlu0 %779
        %781 = vrot.lane.b32.xlu0 %v771, 120
        %v782 = vpop.permute.xlu0 %781
        %783 = vrot.lane.b32.xlu0 %v772, 120
        %v784 = vpop.permute.xlu0 %783
        %v785 = vsel %vm517, %v778, %v780
        %v786 = vsel %vm517, %v780, %v782
        %v787 = vsel %vm517, %v782, %v784
        %v791 = vadd.f32 %v762, %v785
        %v792 = vadd.f32 %v763, %v786
        %v793 = vadd.f32 %v764, %v787
        %v794 = vand.u32 2147483647, %v791
        %vm795 = vcmp.le.f32.partialorder %v794, 0.7853982
        %vm796 = vcmp.lt.s32.totalorder %v791, 0
        %v797 = vand.u32 %v791, 2139095040
        %v798 = vshrl.u32 %v797, 23
        %v799 = vsub.s32 %v798, 127
        %v800 = vand.u32 2147483647, %v791
        %v801 = vand.u32 %v800, 8388607
        %v802 = vor.u32 %v801, 8388608
        %v803 = vsub.s32 0, %v802
        %v804 = vadd.s32 %v799, 1
        %vm805 = vcmp.gt.s32.totalorder %v804, 0
        %v806 = vsel %vm805, %v804, 0
        %v807 = vshrl.u32 %v806, 5
        %v808 = vand.u32 %v806, 31
        %v809 = vsub.s32 32, %v808
        %v810 = vshrl.u32 683565275, %v809
        %v811 = vshll.u32 683565275, %v808
        %v812 = vshrl.u32 2475754826, %v809
        %v813 = vor.u32 %v811, %v812
        %v814 = vshll.u32 2475754826, %v808
        %v815 = vshrl.u32 2131351028, %v809
        %v816 = vor.u32 %v814, %v815
        %v817 = vshll.u32 2131351028, %v808
        %v818 = vshrl.u32 2102212464, %v809
        %v819 = vor.u32 %v817, %v818
        %v820 = vshll.u32 2102212464, %v808
        %v821 = vshrl.u32 920167782, %v809
        %v822 = vor.u32 %v820, %v821
        %v823 = vshll.u32 920167782, %v808
        %v824 = vshrl.u32 1326507024, %v809
        %v825 = vor.u32 %v823, %v824
        %vm826 = vcmp.lt.s32.totalorder %v807, 1
        %vm827 = vcmp.lt.s32.totalorder %v807, 2
        %vm828 = vcmp.lt.s32.totalorder %v807, 3
        %vm829 = vcmp.lt.s32.totalorder %v807, 4
        %v830 = vsel %vm826, %v810, %v813
        %v831 = vsel %vm829, %v819, 2102212464
        %v832 = vsel %vm828, %v816, %v831
        %v833 = vsel %vm827, %v830, %v832
        %v834 = vsel %vm826, %v813, %v816
        %v835 = vsel %vm829, %v822, 920167782
        %v836 = vsel %vm828, %v819, %v835
        %v837 = vsel %vm827, %v834, %v836
        %v838 = vsel %vm826, %v816, %v819
        %v839 = vsel %vm829, %v825, 1326507024
        %v840 = vsel %vm828, %v822, %v839
        %v841 = vsel %vm827, %v838, %v840
        %v842 = vshll.u32 %v802, 8
        %v843 = vmul.u32.u64.compose %v842, %v841
        %v844 = vextract.low.u32 %v843
        %v845 = vextract.high.u32 %v843
        %v846 = vmul.u32.u64.compose %v842, %v837
        %v847 = vextract.low.u32 %v846
        %v848 = vextract.high.u32 %v846
        %v849 = vmul.u32 %v842, %v833
        %v850 = vadd.s32 %v845, %v847
        %vm851 = vc.u32 %v845, %v847
        %v852 = vadd.s32 %v848, 1
        %v853 = vsel %vm851, %v852, %v848
        %v854 = vadd.s32 %v849, %v853
        %v855 = vadd.s32 %v854, 536870912
        %v856 = vshrl.u32 %v855, 30
        %v857 = vshll.u32 %v856, 30
        %v858 = vsub.s32 %v854, %v857
        %vm859 = vcmp.lt.s32.totalorder %v858, 0
        %v860 = vsub.s32 0, %v858
        %v861 = vsel %vm859, %v860, %v858
        %v862 = vclz %v861
        %v863 = vsub.s32 %v862, 2
        %vm864 = vcmp.gt.s32.totalorder 0, %v863
        %v865 = vsel %vm864, 0, %v863
        %v866 = vsub.s32 32, %v865
        %v867 = vshll.u32 %v858, %v865
        %v868 = vshrl.u32 %v850, %v866
        %v869 = vor.u32 %v867, %v868
        %v870 = vsub.s32 4294967266, %v865
        %v871 = vadd.s32 %v870, 127
        %v872 = vshll.u32 %v871, 23
        %v873 = vor.u32 4788187, %v872
        %v874 = vand.u32 2147483647, %v873
        %v876 = vcvt.s32.f32 %v869
        %v877 = vmul.f32 %v876, %v874
        %v878 = vxor.u32 %v877, 2147483648
        %v879 = vsel %vm796, %v878, %v877
        %v880 = vsub.s32 4, %v856
        %v881 = vsel %vm796, %v880, %v856
        %v882 = vsel %vm795, %v791, %v879
        %v883 = vsel %vm795, 0, %v881
        %v884 = vcosq.f32.pop %v882
        %v885 = vsinq.f32.pop %v882
        %vm886 = vweird.f32 %v791
        %v887 = vand.u32 %v883, 3
        %vm888 = vcmp.lt.s32.totalorder %v887, 2
        %vm889 = vcmp.eq.s32.totalorder %v887, 0
        %v890 = vxor.u32 %v885, 2147483648
        %v891 = vsel %vm889, %v884, %v890
        %vm892 = vcmp.eq.s32.totalorder %v887, 2
        %v893 = vxor.u32 %v884, 2147483648
        %v894 = vsel %vm892, %v893, %v885
        %v895 = vsel %vm888, %v891, %v894
        %v896 = vsel %vm886, nan, %v895
        %v897 = vand.u32 2147483647, %v792
        %vm898 = vcmp.le.f32.partialorder %v897, 0.7853982
        %vm899 = vcmp.lt.s32.totalorder %v792, 0
        %v900 = vand.u32 %v792, 2139095040
        %v901 = vshrl.u32 %v900, 23
        %v902 = vsub.s32 %v901, 127
        %v903 = vand.u32 2147483647, %v792
        %v904 = vand.u32 %v903, 8388607
        %v905 = vor.u32 %v904, 8388608
        %v906 = vsub.s32 0, %v905
        %v907 = vadd.s32 %v902, 1
        %vm908 = vcmp.gt.s32.totalorder %v907, 0
        %v909 = vsel %vm908, %v907, 0
        %v910 = vshrl.u32 %v909, 5
        %v911 = vand.u32 %v909, 31
        %v912 = vsub.s32 32, %v911
        %v913 = vshrl.u32 683565275, %v912
        %v914 = vshll.u32 683565275, %v911
        %v915 = vshrl.u32 2475754826, %v912
        %v916 = vor.u32 %v914, %v915
        %v917 = vshll.u32 2475754826, %v911
        %v918 = vshrl.u32 2131351028, %v912
        %v919 = vor.u32 %v917, %v918
        %v920 = vshll.u32 2131351028, %v911
        %v921 = vshrl.u32 2102212464, %v912
        %v922 = vor.u32 %v920, %v921
        %v923 = vshll.u32 2102212464, %v911
        %v924 = vshrl.u32 920167782, %v912
        %v925 = vor.u32 %v923, %v924
        %v926 = vshll.u32 920167782, %v911
        %v927 = vshrl.u32 1326507024, %v912
        %v928 = vor.u32 %v926, %v927
        %vm929 = vcmp.lt.s32.totalorder %v910, 1
        %vm930 = vcmp.lt.s32.totalorder %v910, 2
        %vm931 = vcmp.lt.s32.totalorder %v910, 3
        %vm932 = vcmp.lt.s32.totalorder %v910, 4
        %v933 = vsel %vm929, %v913, %v916
        %v934 = vsel %vm932, %v922, 2102212464
        %v935 = vsel %vm931, %v919, %v934
        %v936 = vsel %vm930, %v933, %v935
        %v937 = vsel %vm929, %v916, %v919
        %v938 = vsel %vm932, %v925, 920167782
        %v939 = vsel %vm931, %v922, %v938
        %v940 = vsel %vm930, %v937, %v939
        %v941 = vsel %vm929, %v919, %v922
        %v942 = vsel %vm932, %v928, 1326507024
        %v943 = vsel %vm931, %v925, %v942
        %v944 = vsel %vm930, %v941, %v943
        %v945 = vshll.u32 %v905, 8
        %v946 = vmul.u32.u64.compose %v945, %v944
        %v947 = vextract.low.u32 %v946
        %v948 = vextract.high.u32 %v946
        %v949 = vmul.u32.u64.compose %v945, %v940
        %v950 = vextract.low.u32 %v949
        %v951 = vextract.high.u32 %v949
        %v952 = vmul.u32 %v945, %v936
        %v953 = vadd.s32 %v948, %v950
        %vm954 = vc.u32 %v948, %v950
        %v955 = vadd.s32 %v951, 1
        %v956 = vsel %vm954, %v955, %v951
        %v957 = vadd.s32 %v952, %v956
        %v958 = vadd.s32 %v957, 536870912
        %v959 = vshrl.u32 %v958, 30
        %v960 = vshll.u32 %v959, 30
        %v961 = vsub.s32 %v957, %v960
        %vm962 = vcmp.lt.s32.totalorder %v961, 0
        %v963 = vsub.s32 0, %v961
        %v964 = vsel %vm962, %v963, %v961
        %v965 = vclz %v964
        %v966 = vsub.s32 %v965, 2
        %vm967 = vcmp.gt.s32.totalorder 0, %v966
        %v968 = vsel %vm967, 0, %v966
        %v969 = vsub.s32 32, %v968
        %v970 = vshll.u32 %v961, %v968
        %v971 = vshrl.u32 %v953, %v969
        %v972 = vor.u32 %v970, %v971
        %v973 = vsub.s32 4294967266, %v968
        %v974 = vadd.s32 %v973, 127
        %v975 = vshll.u32 %v974, 23
        %v976 = vor.u32 4788187, %v975
        %v977 = vand.u32 2147483647, %v976
        %v979 = vcvt.s32.f32 %v972
        %v980 = vmul.f32 %v979, %v977
        %v981 = vxor.u32 %v980, 2147483648
        %v982 = vsel %vm899, %v981, %v980
        %v983 = vsub.s32 4, %v959
        %v984 = vsel %vm899, %v983, %v959
        %v985 = vsel %vm898, %v792, %v982
        %v986 = vsel %vm898, 0, %v984
        %v987 = vcosq.f32.pop %v985
        %v988 = vsinq.f32.pop %v985
        %vm989 = vweird.f32 %v792
        %v990 = vand.u32 %v986, 3
        %vm991 = vcmp.lt.s32.totalorder %v990, 2
        %vm992 = vcmp.eq.s32.totalorder %v990, 0
        %v993 = vxor.u32 %v988, 2147483648
        %v994 = vsel %vm992, %v987, %v993
        %vm995 = vcmp.eq.s32.totalorder %v990, 2
        %v996 = vxor.u32 %v987, 2147483648
        %v997 = vsel %vm995, %v996, %v988
        %v998 = vsel %vm991, %v994, %v997
        %v999 = vsel %vm989, nan, %v998
        %v1000 = vand.u32 2147483647, %v793
        %vm1001 = vcmp.le.f32.partialorder %v1000, 0.7853982
        %vm1002 = vcmp.lt.s32.totalorder %v793, 0
        %v1003 = vand.u32 %v793, 2139095040
        %v1004 = vshrl.u32 %v1003, 23
        %v1005 = vsub.s32 %v1004, 127
        %v1006 = vand.u32 2147483647, %v793
        %v1007 = vand.u32 %v1006, 8388607
        %v1008 = vor.u32 %v1007, 8388608
        %v1009 = vsub.s32 0, %v1008
        %v1010 = vadd.s32 %v1005, 1
        %vm1011 = vcmp.gt.s32.totalorder %v1010, 0
        %v1012 = vsel %vm1011, %v1010, 0
        %v1013 = vshrl.u32 %v1012, 5
        %v1014 = vand.u32 %v1012, 31
        %v1015 = vsub.s32 32, %v1014
        %v1016 = vshrl.u32 683565275, %v1015
        %v1017 = vshll.u32 683565275, %v1014
        %v1018 = vshrl.u32 2475754826, %v1015
        %v1019 = vor.u32 %v1017, %v1018
        %v1020 = vshll.u32 2475754826, %v1014
        %v1021 = vshrl.u32 2131351028, %v1015
        %v1022 = vor.u32 %v1020, %v1021
        %v1023 = vshll.u32 2131351028, %v1014
        %v1024 = vshrl.u32 2102212464, %v1015
        %v1025 = vor.u32 %v1023, %v1024
        %v1026 = vshll.u32 2102212464, %v1014
        %v1027 = vshrl.u32 920167782, %v1015
        %v1028 = vor.u32 %v1026, %v1027
        %v1029 = vshll.u32 920167782, %v1014
        %v1030 = vshrl.u32 1326507024, %v1015
        %v1031 = vor.u32 %v1029, %v1030
        %vm1032 = vcmp.lt.s32.totalorder %v1013, 1
        %vm1033 = vcmp.lt.s32.totalorder %v1013, 2
        %vm1034 = vcmp.lt.s32.totalorder %v1013, 3
        %vm1035 = vcmp.lt.s32.totalorder %v1013, 4
        %v1036 = vsel %vm1032, %v1016, %v1019
        %v1037 = vsel %vm1035, %v1025, 2102212464
        %v1038 = vsel %vm1034, %v1022, %v1037
        %v1039 = vsel %vm1033, %v1036, %v1038
        %v1040 = vsel %vm1032, %v1019, %v1022
        %v1041 = vsel %vm1035, %v1028, 920167782
        %v1042 = vsel %vm1034, %v1025, %v1041
        %v1043 = vsel %vm1033, %v1040, %v1042
        %v1044 = vsel %vm1032, %v1022, %v1025
        %v1045 = vsel %vm1035, %v1031, 1326507024
        %v1046 = vsel %vm1034, %v1028, %v1045
        %v1047 = vsel %vm1033, %v1044, %v1046
        %v1048 = vshll.u32 %v1008, 8
        %v1049 = vmul.u32.u64.compose %v1048, %v1047
        %v1050 = vextract.low.u32 %v1049
        %v1051 = vextract.high.u32 %v1049
        %v1052 = vmul.u32.u64.compose %v1048, %v1043
        %v1053 = vextract.low.u32 %v1052
        %v1054 = vextract.high.u32 %v1052
        %v1055 = vmul.u32 %v1048, %v1039
        %v1056 = vadd.s32 %v1051, %v1053
        %vm1057 = vc.u32 %v1051, %v1053
        %v1058 = vadd.s32 %v1054, 1
        %v1059 = vsel %vm1057, %v1058, %v1054
        %v1060 = vadd.s32 %v1055, %v1059
        %v1061 = vadd.s32 %v1060, 536870912
        %v1062 = vshrl.u32 %v1061, 30
        %v1063 = vshll.u32 %v1062, 30
        %v1064 = vsub.s32 %v1060, %v1063
        %vm1065 = vcmp.lt.s32.totalorder %v1064, 0
        %v1066 = vsub.s32 0, %v1064
        %v1067 = vsel %vm1065, %v1066, %v1064
        %v1068 = vclz %v1067
        %v1069 = vsub.s32 %v1068, 2
        %vm1070 = vcmp.gt.s32.totalorder 0, %v1069
        %v1071 = vsel %vm1070, 0, %v1069
        %v1072 = vsub.s32 32, %v1071
        %v1073 = vshll.u32 %v1064, %v1071
        %v1074 = vshrl.u32 %v1056, %v1072
        %v1075 = vor.u32 %v1073, %v1074
        %v1076 = vsub.s32 4294967266, %v1071
        %v1077 = vadd.s32 %v1076, 127
        %v1078 = vshll.u32 %v1077, 23
        %v1079 = vor.u32 4788187, %v1078
        %v1080 = vand.u32 2147483647, %v1079
        %v1082 = vcvt.s32.f32 %v1075
        %v1083 = vmul.f32 %v1082, %v1080
        %v1084 = vxor.u32 %v1083, 2147483648
        %v1085 = vsel %vm1002, %v1084, %v1083
        %v1086 = vsub.s32 4, %v1062
        %v1087 = vsel %vm1002, %v1086, %v1062
        %v1088 = vsel %vm1001, %v793, %v1085
        %v1089 = vsel %vm1001, 0, %v1087
        %v1090 = vcosq.f32.pop %v1088
        %v1091 = vsinq.f32.pop %v1088
        %vm1092 = vweird.f32 %v793
        %v1093 = vand.u32 %v1089, 3
        %vm1094 = vcmp.lt.s32.totalorder %v1093, 2
        %vm1095 = vcmp.eq.s32.totalorder %v1093, 0
        %v1096 = vxor.u32 %v1091, 2147483648
        %v1097 = vsel %vm1095, %v1090, %v1096
        %vm1098 = vcmp.eq.s32.totalorder %v1093, 2
        %v1099 = vxor.u32 %v1090, 2147483648
        %v1100 = vsel %vm1098, %v1099, %v1091
        %v1101 = vsel %vm1094, %v1097, %v1100
        %v1102 = vsel %vm1092, nan, %v1101
        %v1103 = vand.u32 2147483647, %v791
        %vm1104 = vcmp.le.f32.partialorder %v1103, 0.7853982
        %vm1105 = vcmp.lt.s32.totalorder %v791, 0
        %v1106 = vand.u32 %v791, 2139095040
        %v1107 = vshrl.u32 %v1106, 23
        %v1108 = vsub.s32 %v1107, 127
        %v1109 = vand.u32 2147483647, %v791
        %v1110 = vand.u32 %v1109, 8388607
        %v1111 = vor.u32 %v1110, 8388608
        %v1112 = vsub.s32 0, %v1111
        %v1113 = vadd.s32 %v1108, 1
        %vm1114 = vcmp.gt.s32.totalorder %v1113, 0
        %v1115 = vsel %vm1114, %v1113, 0
        %v1116 = vshrl.u32 %v1115, 5
        %v1117 = vand.u32 %v1115, 31
        %v1118 = vsub.s32 32, %v1117
        %v1119 = vshrl.u32 683565275, %v1118
        %v1120 = vshll.u32 683565275, %v1117
        %v1121 = vshrl.u32 2475754826, %v1118
        %v1122 = vor.u32 %v1120, %v1121
        %v1123 = vshll.u32 2475754826, %v1117
        %v1124 = vshrl.u32 2131351028, %v1118
        %v1125 = vor.u32 %v1123, %v1124
        %v1126 = vshll.u32 2131351028, %v1117
        %v1127 = vshrl.u32 2102212464, %v1118
        %v1128 = vor.u32 %v1126, %v1127
        %v1129 = vshll.u32 2102212464, %v1117
        %v1130 = vshrl.u32 920167782, %v1118
        %v1131 = vor.u32 %v1129, %v1130
        %v1132 = vshll.u32 920167782, %v1117
        %v1133 = vshrl.u32 1326507024, %v1118
        %v1134 = vor.u32 %v1132, %v1133
        %vm1135 = vcmp.lt.s32.totalorder %v1116, 1
        %vm1136 = vcmp.lt.s32.totalorder %v1116, 2
        %vm1137 = vcmp.lt.s32.totalorder %v1116, 3
        %vm1138 = vcmp.lt.s32.totalorder %v1116, 4
        %v1139 = vsel %vm1135, %v1119, %v1122
        %v1140 = vsel %vm1138, %v1128, 2102212464
        %v1141 = vsel %vm1137, %v1125, %v1140
        %v1142 = vsel %vm1136, %v1139, %v1141
        %v1143 = vsel %vm1135, %v1122, %v1125
        %v1144 = vsel %vm1138, %v1131, 920167782
        %v1145 = vsel %vm1137, %v1128, %v1144
        %v1146 = vsel %vm1136, %v1143, %v1145
        %v1147 = vsel %vm1135, %v1125, %v1128
        %v1148 = vsel %vm1138, %v1134, 1326507024
        %v1149 = vsel %vm1137, %v1131, %v1148
        %v1150 = vsel %vm1136, %v1147, %v1149
        %v1151 = vshll.u32 %v1111, 8
        %v1152 = vmul.u32.u64.compose %v1151, %v1150
        %v1153 = vextract.low.u32 %v1152
        %v1154 = vextract.high.u32 %v1152
        %v1155 = vmul.u32.u64.compose %v1151, %v1146
        %v1156 = vextract.low.u32 %v1155
        %v1157 = vextract.high.u32 %v1155
        %v1158 = vmul.u32 %v1151, %v1142
        %v1159 = vadd.s32 %v1154, %v1156
        %vm1160 = vc.u32 %v1154, %v1156
        %v1161 = vadd.s32 %v1157, 1
        %v1162 = vsel %vm1160, %v1161, %v1157
        %v1163 = vadd.s32 %v1158, %v1162
        %v1164 = vadd.s32 %v1163, 536870912
        %v1165 = vshrl.u32 %v1164, 30
        %v1166 = vshll.u32 %v1165, 30
        %v1167 = vsub.s32 %v1163, %v1166
        %vm1168 = vcmp.lt.s32.totalorder %v1167, 0
        %v1169 = vsub.s32 0, %v1167
        %v1170 = vsel %vm1168, %v1169, %v1167
        %v1171 = vclz %v1170
        %v1172 = vsub.s32 %v1171, 2
        %vm1173 = vcmp.gt.s32.totalorder 0, %v1172
        %v1174 = vsel %vm1173, 0, %v1172
        %v1175 = vsub.s32 32, %v1174
        %v1176 = vshll.u32 %v1167, %v1174
        %v1177 = vshrl.u32 %v1159, %v1175
        %v1178 = vor.u32 %v1176, %v1177
        %v1179 = vsub.s32 4294967266, %v1174
        %v1180 = vadd.s32 %v1179, 127
        %v1181 = vshll.u32 %v1180, 23
        %v1182 = vor.u32 4788187, %v1181
        %v1183 = vand.u32 2147483647, %v1182
        %v1185 = vcvt.s32.f32 %v1178
        %v1186 = vmul.f32 %v1185, %v1183
        %v1187 = vxor.u32 %v1186, 2147483648
        %v1188 = vsel %vm1105, %v1187, %v1186
        %v1189 = vsub.s32 4, %v1165
        %v1190 = vsel %vm1105, %v1189, %v1165
        %v1191 = vsel %vm1104, %v791, %v1188
        %v1192 = vsel %vm1104, 0, %v1190
        %v1193 = vcosq.f32.pop %v1191
        %v1194 = vsinq.f32.pop %v1191
        %vm1195 = vweird.f32 %v791
        %v1196 = vadd.s32 %v1192, 3
        %v1197 = vand.u32 %v1196, 3
        %vm1198 = vcmp.lt.s32.totalorder %v1197, 2
        %vm1199 = vcmp.eq.s32.totalorder %v1197, 0
        %v1200 = vxor.u32 %v1194, 2147483648
        %v1201 = vsel %vm1199, %v1193, %v1200
        %vm1202 = vcmp.eq.s32.totalorder %v1197, 2
        %v1203 = vxor.u32 %v1193, 2147483648
        %v1204 = vsel %vm1202, %v1203, %v1194
        %v1205 = vsel %vm1198, %v1201, %v1204
        %v1206 = vsel %vm1195, nan, %v1205
        %v1207 = vand.u32 2147483647, %v792
        %vm1208 = vcmp.le.f32.partialorder %v1207, 0.7853982
        %vm1209 = vcmp.lt.s32.totalorder %v792, 0
        %v1210 = vand.u32 %v792, 2139095040
        %v1211 = vshrl.u32 %v1210, 23
        %v1212 = vsub.s32 %v1211, 127
        %v1213 = vand.u32 2147483647, %v792
        %v1214 = vand.u32 %v1213, 8388607
        %v1215 = vor.u32 %v1214, 8388608
        %v1216 = vsub.s32 0, %v1215
        %v1217 = vadd.s32 %v1212, 1
        %vm1218 = vcmp.gt.s32.totalorder %v1217, 0
        %v1219 = vsel %vm1218, %v1217, 0
        %v1220 = vshrl.u32 %v1219, 5
        %v1221 = vand.u32 %v1219, 31
        %v1222 = vsub.s32 32, %v1221
        %v1223 = vshrl.u32 683565275, %v1222
        %v1224 = vshll.u32 683565275, %v1221
        %v1225 = vshrl.u32 2475754826, %v1222
        %v1226 = vor.u32 %v1224, %v1225
        %v1227 = vshll.u32 2475754826, %v1221
        %v1228 = vshrl.u32 2131351028, %v1222
        %v1229 = vor.u32 %v1227, %v1228
        %v1230 = vshll.u32 2131351028, %v1221
        %v1231 = vshrl.u32 2102212464, %v1222
        %v1232 = vor.u32 %v1230, %v1231
        %v1233 = vshll.u32 2102212464, %v1221
        %v1234 = vshrl.u32 920167782, %v1222
        %v1235 = vor.u32 %v1233, %v1234
        %v1236 = vshll.u32 920167782, %v1221
        %v1237 = vshrl.u32 1326507024, %v1222
        %v1238 = vor.u32 %v1236, %v1237
        %vm1239 = vcmp.lt.s32.totalorder %v1220, 1
        %vm1240 = vcmp.lt.s32.totalorder %v1220, 2
        %vm1241 = vcmp.lt.s32.totalorder %v1220, 3
        %vm1242 = vcmp.lt.s32.totalorder %v1220, 4
        %v1243 = vsel %vm1239, %v1223, %v1226
        %v1244 = vsel %vm1242, %v1232, 2102212464
        %v1245 = vsel %vm1241, %v1229, %v1244
        %v1246 = vsel %vm1240, %v1243, %v1245
        %v1247 = vsel %vm1239, %v1226, %v1229
        %v1248 = vsel %vm1242, %v1235, 920167782
        %v1249 = vsel %vm1241, %v1232, %v1248
        %v1250 = vsel %vm1240, %v1247, %v1249
        %v1251 = vsel %vm1239, %v1229, %v1232
        %v1252 = vsel %vm1242, %v1238, 1326507024
        %v1253 = vsel %vm1241, %v1235, %v1252
        %v1254 = vsel %vm1240, %v1251, %v1253
        %v1255 = vshll.u32 %v1215, 8
        %v1256 = vmul.u32.u64.compose %v1255, %v1254
        %v1257 = vextract.low.u32 %v1256
        %v1258 = vextract.high.u32 %v1256
        %v1259 = vmul.u32.u64.compose %v1255, %v1250
        %v1260 = vextract.low.u32 %v1259
        %v1261 = vextract.high.u32 %v1259
        %v1262 = vmul.u32 %v1255, %v1246
        %v1263 = vadd.s32 %v1258, %v1260
        %vm1264 = vc.u32 %v1258, %v1260
        %v1265 = vadd.s32 %v1261, 1
        %v1266 = vsel %vm1264, %v1265, %v1261
        %v1267 = vadd.s32 %v1262, %v1266
        %v1268 = vadd.s32 %v1267, 536870912
        %v1269 = vshrl.u32 %v1268, 30
        %v1270 = vshll.u32 %v1269, 30
        %v1271 = vsub.s32 %v1267, %v1270
        %vm1272 = vcmp.lt.s32.totalorder %v1271, 0
        %v1273 = vsub.s32 0, %v1271
        %v1274 = vsel %vm1272, %v1273, %v1271
        %v1275 = vclz %v1274
        %v1276 = vsub.s32 %v1275, 2
        %vm1277 = vcmp.gt.s32.totalorder 0, %v1276
        %v1278 = vsel %vm1277, 0, %v1276
        %v1279 = vsub.s32 32, %v1278
        %v1280 = vshll.u32 %v1271, %v1278
        %v1281 = vshrl.u32 %v1263, %v1279
        %v1282 = vor.u32 %v1280, %v1281
        %v1283 = vsub.s32 4294967266, %v1278
        %v1284 = vadd.s32 %v1283, 127
        %v1285 = vshll.u32 %v1284, 23
        %v1286 = vor.u32 4788187, %v1285
        %v1287 = vand.u32 2147483647, %v1286
        %v1289 = vcvt.s32.f32 %v1282
        %v1290 = vmul.f32 %v1289, %v1287
        %v1291 = vxor.u32 %v1290, 2147483648
        %v1292 = vsel %vm1209, %v1291, %v1290
        %v1293 = vsub.s32 4, %v1269
        %v1294 = vsel %vm1209, %v1293, %v1269
        %v1295 = vsel %vm1208, %v792, %v1292
        %v1296 = vsel %vm1208, 0, %v1294
        %v1297 = vcosq.f32.pop %v1295
        %v1298 = vsinq.f32.pop %v1295
        %vm1299 = vweird.f32 %v792
        %v1300 = vadd.s32 %v1296, 3
        %v1301 = vand.u32 %v1300, 3
        %vm1302 = vcmp.lt.s32.totalorder %v1301, 2
        %vm1303 = vcmp.eq.s32.totalorder %v1301, 0
        %v1304 = vxor.u32 %v1298, 2147483648
        %v1305 = vsel %vm1303, %v1297, %v1304
        %vm1306 = vcmp.eq.s32.totalorder %v1301, 2
        %v1307 = vxor.u32 %v1297, 2147483648
        %v1308 = vsel %vm1306, %v1307, %v1298
        %v1309 = vsel %vm1302, %v1305, %v1308
        %v1310 = vsel %vm1299, nan, %v1309
        %v1311 = vand.u32 2147483647, %v793
        %vm1312 = vcmp.le.f32.partialorder %v1311, 0.7853982
        %vm1313 = vcmp.lt.s32.totalorder %v793, 0
        %v1314 = vand.u32 %v793, 2139095040
        %v1315 = vshrl.u32 %v1314, 23
        %v1316 = vsub.s32 %v1315, 127
        %v1317 = vand.u32 2147483647, %v793
        %v1318 = vand.u32 %v1317, 8388607
        %v1319 = vor.u32 %v1318, 8388608
        %v1320 = vsub.s32 0, %v1319
        %v1321 = vadd.s32 %v1316, 1
        %vm1322 = vcmp.gt.s32.totalorder %v1321, 0
        %v1323 = vsel %vm1322, %v1321, 0
        %v1324 = vshrl.u32 %v1323, 5
        %v1325 = vand.u32 %v1323, 31
        %v1326 = vsub.s32 32, %v1325
        %v1327 = vshrl.u32 683565275, %v1326
        %v1328 = vshll.u32 683565275, %v1325
        %v1329 = vshrl.u32 2475754826, %v1326
        %v1330 = vor.u32 %v1328, %v1329
        %v1331 = vshll.u32 2475754826, %v1325
        %v1332 = vshrl.u32 2131351028, %v1326
        %v1333 = vor.u32 %v1331, %v1332
        %v1334 = vshll.u32 2131351028, %v1325
        %v1335 = vshrl.u32 2102212464, %v1326
        %v1336 = vor.u32 %v1334, %v1335
        %v1337 = vshll.u32 2102212464, %v1325
        %v1338 = vshrl.u32 920167782, %v1326
        %v1339 = vor.u32 %v1337, %v1338
        %v1340 = vshll.u32 920167782, %v1325
        %v1341 = vshrl.u32 1326507024, %v1326
        %v1342 = vor.u32 %v1340, %v1341
        %vm1343 = vcmp.lt.s32.totalorder %v1324, 1
        %vm1344 = vcmp.lt.s32.totalorder %v1324, 2
        %vm1345 = vcmp.lt.s32.totalorder %v1324, 3
        %vm1346 = vcmp.lt.s32.totalorder %v1324, 4
        %v1347 = vsel %vm1343, %v1327, %v1330
        %v1348 = vsel %vm1346, %v1336, 2102212464
        %v1349 = vsel %vm1345, %v1333, %v1348
        %v1350 = vsel %vm1344, %v1347, %v1349
        %v1351 = vsel %vm1343, %v1330, %v1333
        %v1352 = vsel %vm1346, %v1339, 920167782
        %v1353 = vsel %vm1345, %v1336, %v1352
        %v1354 = vsel %vm1344, %v1351, %v1353
        %v1355 = vsel %vm1343, %v1333, %v1336
        %v1356 = vsel %vm1346, %v1342, 1326507024
        %v1357 = vsel %vm1345, %v1339, %v1356
        %v1358 = vsel %vm1344, %v1355, %v1357
        %v1359 = vshll.u32 %v1319, 8
        %v1360 = vmul.u32.u64.compose %v1359, %v1358
        %v1361 = vextract.low.u32 %v1360
        %v1362 = vextract.high.u32 %v1360
        %v1363 = vmul.u32.u64.compose %v1359, %v1354
        %v1364 = vextract.low.u32 %v1363
        %v1365 = vextract.high.u32 %v1363
        %v1366 = vmul.u32 %v1359, %v1350
        %v1367 = vadd.s32 %v1362, %v1364
        %vm1368 = vc.u32 %v1362, %v1364
        %v1369 = vadd.s32 %v1365, 1
        %v1370 = vsel %vm1368, %v1369, %v1365
        %v1371 = vadd.s32 %v1366, %v1370
        %v1372 = vadd.s32 %v1371, 536870912
        %v1373 = vshrl.u32 %v1372, 30
        %v1374 = vshll.u32 %v1373, 30
        %v1375 = vsub.s32 %v1371, %v1374
        %vm1376 = vcmp.lt.s32.totalorder %v1375, 0
        %v1377 = vsub.s32 0, %v1375
        %v1378 = vsel %vm1376, %v1377, %v1375
        %v1379 = vclz %v1378
        %v1380 = vsub.s32 %v1379, 2
        %vm1381 = vcmp.gt.s32.totalorder 0, %v1380
        %v1382 = vsel %vm1381, 0, %v1380
        %v1383 = vsub.s32 32, %v1382
        %v1384 = vshll.u32 %v1375, %v1382
        %v1385 = vshrl.u32 %v1367, %v1383
        %v1386 = vor.u32 %v1384, %v1385
        %v1387 = vsub.s32 4294967266, %v1382
        %v1388 = vadd.s32 %v1387, 127
        %v1389 = vshll.u32 %v1388, 23
        %v1390 = vor.u32 4788187, %v1389
        %v1391 = vand.u32 2147483647, %v1390
        %v1393 = vcvt.s32.f32 %v1386
        %v1394 = vmul.f32 %v1393, %v1391
        %v1395 = vxor.u32 %v1394, 2147483648
        %v1396 = vsel %vm1313, %v1395, %v1394
        %v1397 = vsub.s32 4, %v1373
        %v1398 = vsel %vm1313, %v1397, %v1373
        %v1399 = vsel %vm1312, %v793, %v1396
        %v1400 = vsel %vm1312, 0, %v1398
        %v1401 = vcosq.f32.pop %v1399
        %v1402 = vsinq.f32.pop %v1399
        %vm1403 = vweird.f32 %v793
        %v1404 = vadd.s32 %v1400, 3
        %v1405 = vand.u32 %v1404, 3
        %vm1406 = vcmp.lt.s32.totalorder %v1405, 2
        %vm1407 = vcmp.eq.s32.totalorder %v1405, 0
        %v1408 = vxor.u32 %v1402, 2147483648
        %v1409 = vsel %vm1407, %v1401, %v1408
        %vm1410 = vcmp.eq.s32.totalorder %v1405, 2
        %v1411 = vxor.u32 %v1401, 2147483648
        %v1412 = vsel %vm1410, %v1411, %v1402
        %v1413 = vsel %vm1406, %v1409, %v1412
        %v1414 = vsel %vm1403, nan, %v1413
        %1418 = vrot.lane.b32.xlu0 %v254, 124
        %v1419 = vpop.permute.xlu0 %1418
        %1420 = vrot.lane.b32.xlu0 %v255, 124
        %v1421 = vpop.permute.xlu0 %1420
        %1422 = vrot.lane.b32.xlu0 %v256, 124
        %v1423 = vpop.permute.xlu0 %1422
        %v1424 = vsel %vm397, %v1419, %v1421
        %v1425 = vsel %vm397, %v1421, %v1423
        %1430 = vrot.lane.b32.xlu0 %v257, 124
        %v1431 = vpop.permute.xlu0 %1430
        %v1433 = vsel %vm397, %v1423, %v1431
        %v1434 = vmul.f32 %v1424, %v896
        %v1435 = vmul.f32 %v1425, %v999
        %v1436 = vmul.f32 %v1433, %v1102
        %v1440 = vrot.slane %v1206, 4
        %v1441 = vrot.slane %v1310, 4
        %v1442 = vrot.slane %v1414, 4
        %v1446 = vmul.f32 %v1424, %v1440
        %v1447 = vmul.f32 %v1425, %v1441
        %v1448 = vmul.f32 %v1433, %v1442
        %v1452 = vrot.slane %v1446, 4
        %v1453 = vrot.slane %v1447, 4
        %v1454 = vrot.slane %v1448, 4
        %v1458 = vsub.f32 %v1434, %v1452
        %v1459 = vsub.f32 %v1435, %v1453
        %v1460 = vsub.f32 %v1436, %v1454
        %v1461 = vmul.f32 %v1424, %v1206
        %v1462 = vmul.f32 %v1425, %v1310
        %v1463 = vmul.f32 %v1433, %v1414
        %v1467 = vrot.slane %v896, 4
        %v1468 = vrot.slane %v999, 4
        %v1469 = vrot.slane %v1102, 4
        %v1473 = vmul.f32 %v1424, %v1467
        %v1474 = vmul.f32 %v1425, %v1468
        %v1475 = vmul.f32 %v1433, %v1469
        %v1479 = vrot.slane %v1473, 4
        %v1480 = vrot.slane %v1474, 4
        %v1481 = vrot.slane %v1475, 4
        %v1485 = vadd.f32 %v1461, %v1479
        %v1486 = vadd.f32 %v1462, %v1480
        %v1487 = vadd.f32 %v1463, %v1481
        %v1491 = vrot.slane %v1485, 4
        %v1492 = vrot.slane %v1486, 4
        %v1493 = vrot.slane %v1487, 4
        %vm1497 = vcmask 1043456
        %v1498 = vsel %vm1497, %v1458, %v1491
        %v1499 = vsel %vm1497, %v1459, %v1492
        %v1500 = vsel %vm1497, %v1460, %v1493
        %1501 = vst [vmem:[%s245] sm:$0xff] %v1498
        %1502 = vst [vmem:[%s245 + $0x8] sm:$0xff] %v1499
        %1503 = vst [vmem:[%s245 + $0x10] sm:$0xff] %v1500
        %s1504 = sand.u32 %s106, 1
        %s1505 = scalar_lea.sflag [#allocation4], %s1504
        %s1506 = sand.u32 %s106, 1
        %s1507 = smul.addr %s1506, 24
        %s1508 = scalar_lea.vmem [#allocation8], %s1507
        // Predicated region
        $region45: #{tpu_custom_call.1} parent=31 // pred_check
          %p1509 = pneg %p116
        $region46: #{tpu_custom_call.1} parent=31 // pred_check_branch
          %1511 = sbr.rel (%p1509) target = $region48
        $region47: #{tpu_custom_call.1} parent=31 // pred_region
          %s1512 = smul.u32 3, %s21
          %s1514 = ssub.s32 384, 384
          %1515 = vsyncadd %s1505, %s1514
          %s1516 = smul.addr %s1512, 128
          %s1517 = scalar_lea.hbm %s3, %s1516
          %s1519 = sshll.u32 %s1508, 4
          %s1520 = int_to_ptr.vmem [resolvable:$true] %s1519
          %1522 = dma.vmem_to_hbm [thread:$0]  %s1520, 384, %s1517, %s1505
        $region48: #{tpu_custom_call.1} parent=31 // pred_fallthru
          _
      $region32: #{tpu_custom_call.1} parent=5 // pred_fallthru
        _
      %p1523 = scmp.le.s32.totalorder 2, %s16
      // Predicated region
      $region49: #{tpu_custom_call.1} parent=5 // pred_check
        %p1524 = pneg %p1523
      $region50: #{tpu_custom_call.1} parent=5 // pred_check_branch
        %1526 = sbr.rel (%p1524) target = $region52
      $region51: #{tpu_custom_call.1} parent=5 // pred_region
        %s1527 = ssub.s32 %s16, 2
        // Predicated region
        $region53: #{tpu_custom_call.1} parent=51 // pred_check
          %p1528 = pneg %p122
        $region54: #{tpu_custom_call.1} parent=51 // pred_check_branch
          %1530 = sbr.rel (%p1528) target = $region56
        $region55: #{tpu_custom_call.1} parent=51 // pred_region
          %s1531 = sand.u32 %s107, 1
          %s1532 = scalar_lea.sflag [#allocation4], %s1531
          %s1533 = sand.u32 %s107, 1
          %s1534 = smul.addr %s1533, 24
          %s1535 = scalar_lea.vmem [#allocation8], %s1534
          %1536 = dma.done %s1532, 384
        $region56: #{tpu_custom_call.1} parent=51 // pred_fallthru
          _
      $region52: #{tpu_custom_call.1} parent=5 // pred_fallthru
        _
    $region6: #{tpu_custom_call.1} parent=1 // loop_footer
      %s20 = sadd.s32 1, %s16
    $region7: #{tpu_custom_call.1} parent=1 // loop_footer_branch
      %15 = sbr.rel target = $region3
    $region8: #{tpu_custom_call.1} parent=1 // loop_exit
      _
    %1537 = vsyncpa [#allocation3], 1
    %s1538 = scalar_lea.sflag [#allocation3], 1
    %1539 = vsyncpa %s1538, 1
    %1540 = vsyncpa [#allocation6], 1
    %s1541 = scalar_lea.sflag [#allocation6], 1
    %1542 = vsyncpa %s1541, 1
    %1543 = vsyncpa [#allocation4], 1
    %s1544 = scalar_lea.sflag [#allocation4], 1
    %1545 = vsyncpa %s1544, 1

</llo_original>
